<compile_context>
chip_gen: v6e
topology: v6e:2x2x1
jax: 0.10.0
libtpu: 0.0.40
codegen_flags: <defaults>
</compile_context>

<pallas_src>
import functools

import jax
import jax.numpy as jnp
from jax import lax
from jax.experimental import pallas as pl
from jax.experimental.pallas import tpu as pltpu

EPS = 1e-5
LANE = 128
CLASS_PAD = 128                      # lane-dense head output
VMEM_LIMIT = 48 * 1024 * 1024        # v7x-safe (64 MiB physical per TC)


def _round_up(x, m):
    return (x + m - 1) // m * m


def _silu(x):
    return x * jax.nn.sigmoid(x)


def _softplus(x):
    return jnp.logaddexp(x, 0.0)


# -----------------------------------------------------------------------------
# Fused kernel: all layers + final norm + head.  One batch element per outer
# grid step, one layer per inner grid step.
# -----------------------------------------------------------------------------
def mamba_fused_kernel(emb_ref, nw_ref, inw_ref, convw_ref, vec_ref, xpw_ref,
                       dtw_ref, alogT_ref, outw_ref, normf_ref, headw_ref,
                       logits_ref,
                       hid_scr, res_scr, xact_scr, dt_scr, bc_scr, y_scr, h_scr,
                       *, L, d_inner, d_state, d_conv, dt_pad, chunk,
                       exp_dtype):
    layer = pl.program_id(1)
    n_layer = pl.num_programs(1)

    @pl.when(layer == 0)
    def _():
        hid_scr[...] = emb_ref[...]               # embedding output
        res_scr[...] = jnp.zeros_like(res_scr)    # first block: residual <- hidden

    # --- fused residual add + RMSNorm (fp32, residual_in_fp32) ---
    res_new = hid_scr[...] + res_scr[...]                      # (L, D)
    res_scr[...] = res_new
    var = jnp.mean(res_new * res_new, axis=-1, keepdims=True)
    normed = res_new * lax.rsqrt(var + EPS) * nw_ref[...]

    # --- in_proj: bf16 MXU operands, fp32 accumulation ---
    xz = jnp.dot(normed.astype(jnp.bfloat16), inw_ref[...],
                 preferred_element_type=jnp.float32)           # (L, 2*d_inner)
    x = xz[:, :d_inner]
    z = xz[:, d_inner:]

    # --- causal depthwise conv1d: d_conv shifted adds (sublane roll + tap) ---
    row = lax.broadcasted_iota(jnp.int32, (L, 1), 0)
    x_conv = vec_ref[0:1, :] + x * convw_ref[d_conv - 1:d_conv, :]
    for s in range(1, d_conv):                                 # static taps
        shifted = pltpu.roll(x, shift=s, axis=0)               # shifted[t] = x[t-s]
        shifted = jnp.where(row >= s, shifted, 0.0)            # zero wrapped rows
        x_conv = x_conv + shifted * convw_ref[d_conv - 1 - s:d_conv - s, :]
    x_act = _silu(x_conv)                                      # (L, d_inner)
    xact_scr[...] = x_act

    # --- fused x_proj (dt | B | C) with lane-aligned sections, then dt_proj ---
    xdbl = jnp.dot(x_act.astype(jnp.bfloat16), xpw_ref[...],
                   preferred_element_type=jnp.float32)         # (L, dt_pad+128)
    dt = jnp.dot(xdbl[:, :dt_pad].astype(jnp.bfloat16), dtw_ref[...],
                 preferred_element_type=jnp.float32) + vec_ref[1:2, :]
    dt_scr[...] = _softplus(dt)                                # (L, d_inner) fp32
    bc_scr[...] = xdbl[:, dt_pad:]                             # (L, 128) lane-dense

    A_T = -jnp.exp(alogT_ref[...])                             # (d_state, d_inner)

    # --- selective scan: per-step dA/dBx, no (chunk, S, Di) temporaries ---
    h_scr[...] = jnp.zeros_like(h_scr)

    def chunk_body(c, carry):
        start = pl.multiple_of(c * chunk, chunk)
        dt_c = dt_scr[pl.ds(start, chunk), :]                  # (T, Di)
        x_c = xact_scr[pl.ds(start, chunk), :]                 # (T, Di)
        dtx_c = dt_c * x_c                                     # (T, Di) in-loop
        bc_c = bc_scr[pl.ds(start, chunk), :]                  # (T, 128)
        bcT_c = bc_c.T                                         # (128, T) tile xpose
        h = h_scr[...]                                         # (S, Di)
        ys = []
        for tt in range(chunk):                                # static unroll
            arg = dt_c[tt:tt + 1, :] * A_T                     # (S, Di)
            dA = jnp.exp(arg.astype(exp_dtype)).astype(jnp.float32)
            dBx = bcT_c[:d_state, tt:tt + 1] * dtx_c[tt:tt + 1, :]   # (S,1)*(1,Di)
            h = dA * h + dBx
            c_row = bc_c[tt:tt + 1, d_state:2 * d_state]       # (1, S)
            ys.append(jnp.dot(c_row, h, preferred_element_type=jnp.float32))
        h_scr[...] = h
        y_scr[pl.ds(start, chunk), :] = jnp.concatenate(ys, axis=0)  # (T, Di)
        return carry

    lax.fori_loop(0, L // chunk, chunk_body, 0)

    y = y_scr[...] + x_act * vec_ref[2:3, :]                   # D skip connection
    y = y * _silu(z)                                           # gate
    out = jnp.dot(y.astype(jnp.bfloat16), outw_ref[...],
                  preferred_element_type=jnp.float32)          # (L, D)
    hid_scr[...] = out

    # --- final fused add + RMSNorm + classification head (last layer only) ---
    @pl.when(layer == n_layer - 1)
    def _():
        res_f = out + res_new
        var_f = jnp.mean(res_f * res_f, axis=-1, keepdims=True)
        nf = res_f * lax.rsqrt(var_f + EPS) * normf_ref[...]
        logits_ref[...] = jnp.dot(nf.astype(jnp.bfloat16), headw_ref[...],
                                  preferred_element_type=jnp.float32)


def _fused_call(emb, stacked, norm_f, head_w, *, n_layer, d_model, d_inner,
                d_state, d_conv, dt_pad, chunk, exp_dtype):
    B, L, D = emb.shape
    kern = functools.partial(mamba_fused_kernel, L=L, d_inner=d_inner,
                             d_state=d_state, d_conv=d_conv, dt_pad=dt_pad,
                             chunk=chunk, exp_dtype=exp_dtype)

    emb_spec = pl.BlockSpec((None, L, D), lambda b, l: (b, 0, 0))

    def layer_spec(a):                     # stacked per-layer weight, indexed by l
        shp = a.shape[1:]
        nd = len(shp)
        return pl.BlockSpec((None,) + shp,
                            lambda b, l, _nd=nd: (l,) + (0,) * _nd)

    def const_spec(a):                     # constant (layer-independent) weight
        nd = a.ndim
        return pl.BlockSpec(a.shape, lambda b, l, _nd=nd: (0,) * _nd)

    in_specs = ([emb_spec] + [layer_spec(a) for a in stacked]
                + [const_spec(norm_f), const_spec(head_w)])
    out_spec = pl.BlockSpec((None, L, CLASS_PAD), lambda b, l: (b, 0, 0))

    return pl.pallas_call(
        kern,
        out_shape=jax.ShapeDtypeStruct((B, L, CLASS_PAD), jnp.float32),
        grid_spec=pltpu.PrefetchScalarGridSpec(
            num_scalar_prefetch=0,
            grid=(B, n_layer),
            in_specs=in_specs,
            out_specs=out_spec,
            scratch_shapes=[
                pltpu.VMEM((L, d_model), jnp.float32),        # hidden (resident)
                pltpu.VMEM((L, d_model), jnp.float32),        # residual (resident)
                pltpu.VMEM((L, d_inner), jnp.float32),        # x_act
                pltpu.VMEM((L, d_inner), jnp.float32),        # softplus(dt)
                pltpu.VMEM((L, LANE), jnp.float32),           # B|C lane-dense slab
                pltpu.VMEM((L, d_inner), jnp.float32),        # scan output y
                pltpu.VMEM((d_state, d_inner), jnp.float32),  # SSM state h
            ]),
        compiler_params=pltpu.CompilerParams(
            dimension_semantics=("parallel", "arbitrary"),
            vmem_limit_bytes=VMEM_LIMIT),
    )(emb, *stacked, norm_f, head_w)


# -----------------------------------------------------------------------------
# Parameter construction (deterministic, synthetic) and full forward.
# -----------------------------------------------------------------------------
def init_model_params(key, *, n_layer, d_model, d_state, d_conv, expand,
                      dt_rank, vocab_size, num_class):
    d_inner = expand * d_model
    dt_pad = _round_up(dt_rank, LANE)
    xp_cols = dt_pad + LANE            # [dt | pad][B | C | pad], both 128-aligned

    def nrm(k, shape, scale=0.02):
        return scale * jax.random.normal(k, shape, dtype=jnp.float32)

    ks = iter(jax.random.split(key, 8))
    params = {"embedding": nrm(next(ks), (vocab_size, d_model))}

    norm_w = jnp.ones((n_layer, 1, d_model), jnp.float32)
    in_w_T = nrm(next(ks), (n_layer, d_model, 2 * d_inner)).astype(jnp.bfloat16)
    conv_w_T = nrm(next(ks), (n_layer, d_conv, d_inner), scale=0.1)
    # packed small vectors: rows = [conv_bias, dt_bias, D_skip]
    vecs = jnp.stack([jnp.zeros((n_layer, d_inner), jnp.float32),
                      jnp.full((n_layer, d_inner), -4.0, jnp.float32),  # softplus(-4)
                      jnp.ones((n_layer, d_inner), jnp.float32)], axis=1)
    xp = jnp.zeros((n_layer, d_inner, xp_cols), jnp.float32)
    xp = xp.at[:, :, :dt_rank].set(nrm(next(ks), (n_layer, d_inner, dt_rank)))
    xp = xp.at[:, :, dt_pad:dt_pad + 2 * d_state].set(
        nrm(next(ks), (n_layer, d_inner, 2 * d_state)))
    xp_w_T = xp.astype(jnp.bfloat16)
    dt_w = jnp.zeros((n_layer, dt_pad, d_inner), jnp.float32)
    dt_w = dt_w.at[:, :dt_rank, :].set(nrm(next(ks), (n_layer, dt_rank, d_inner)))
    dt_w_T = dt_w.astype(jnp.bfloat16)
    A_log_T = jnp.tile(
        jnp.log(jnp.arange(1, d_state + 1, dtype=jnp.float32))[None, :, None],
        (n_layer, 1, d_inner))                                  # (n_layer, S, Di)
    out_w_T = nrm(next(ks), (n_layer, d_inner, d_model)).astype(jnp.bfloat16)

    params["stacked"] = (norm_w, in_w_T, conv_w_T, vecs, xp_w_T, dt_w_T,
                         A_log_T, out_w_T)
    params["norm_f"] = jnp.ones((1, d_model), jnp.float32)
    head = nrm(next(ks), (d_model, num_class))
    head_pad = jnp.zeros((d_model, CLASS_PAD),
                         jnp.float32).at[:, :num_class].set(head)
    params["head_w_T"] = head_pad.astype(jnp.bfloat16)
    return params


def mamba_for_ner_forward(params, input_ids, *, n_layer, d_model, d_inner,
                          d_state, d_conv, dt_rank, num_class, chunk,
                          exp_dtype=jnp.float32, num_last_tokens=0):
    emb = params["embedding"][input_ids]          # (B, L, D)  embedding = glue
    dt_pad = _round_up(dt_rank, LANE)
    logits = _fused_call(emb, params["stacked"], params["norm_f"],
                         params["head_w_T"], n_layer=n_layer, d_model=d_model,
                         d_inner=d_inner, d_state=d_state, d_conv=d_conv,
                         dt_pad=dt_pad, chunk=chunk, exp_dtype=exp_dtype)
    logits = logits[:, :, :num_class]             # drop lane padding
    if num_last_tokens > 0:
        logits = logits[:, -num_last_tokens:]
    return logits


if __name__ == "__main__":
    # Small, config-consistent shapes: expand=2, d_state=16, d_conv=4,
    # dt_rank = ceil(d_model/16), vocab padded to a multiple of 8.
    B, L = 2, 16
    d_model, n_layer = 32, 2
    d_state, d_conv, expand = 16, 4, 2
    d_inner = expand * d_model
    dt_rank = -(-d_model // 16)      # = 2
    vocab_size = 48
    num_class = 9
    chunk = 8                        # scan chunk; multiple of 8, divides L
    assert L % chunk == 0 and chunk % 8 == 0
    assert 2 * d_state <= LANE

    # bf16 exp only where the EUP supports it (v6e / v7x); fp32 elsewhere.
    kind = jax.devices()[0].device_kind.lower()
    exp_dtype = jnp.bfloat16 if ("v6" in kind or "v7" in kind) else jnp.float32

    key = jax.random.PRNGKey(0)
    pkey, dkey = jax.random.split(key)
    params = init_model_params(pkey, n_layer=n_layer, d_model=d_model,
                               d_state=d_state, d_conv=d_conv, expand=expand,
                               dt_rank=dt_rank, vocab_size=vocab_size,
                               num_class=num_class)
    input_ids = jax.random.randint(dkey, (B, L), 0, vocab_size, dtype=jnp.int32)

    fwd = jax.jit(functools.partial(
        mamba_for_ner_forward, n_layer=n_layer, d_model=d_model,
        d_inner=d_inner, d_state=d_state, d_conv=d_conv, dt_rank=dt_rank,
        num_class=num_class, chunk=chunk, exp_dtype=exp_dtype))
    logits = fwd(params, input_ids)
    jax.block_until_ready(logits)

    assert logits.shape == (B, L, num_class), logits.shape
    assert bool(jnp.all(jnp.isfinite(logits)))
    print("KERNEL_OK")
</pallas_src>

<mosaic_0001>
module attributes {stable_mosaic.version = 11 : i64} {
  func.func @mamba_fused_kernel(%arg0: i32, %arg1: i32, %arg2: memref<1x16x32xf32, #tpu.memory_space<vmem>>, %arg3: memref<1x1x32xf32, #tpu.memory_space<vmem>>, %arg4: memref<1x32x128xbf16, #tpu.memory_space<vmem>>, %arg5: memref<1x4x64xf32, #tpu.memory_space<vmem>>, %arg6: memref<1x3x64xf32, #tpu.memory_space<vmem>>, %arg7: memref<1x64x256xbf16, #tpu.memory_space<vmem>>, %arg8: memref<1x128x64xbf16, #tpu.memory_space<vmem>>, %arg9: memref<1x16x64xf32, #tpu.memory_space<vmem>>, %arg10: memref<1x64x32xbf16, #tpu.memory_space<vmem>>, %arg11: memref<1x32xf32, #tpu.memory_space<vmem>>, %arg12: memref<32x128xbf16, #tpu.memory_space<vmem>>, %arg13: memref<1x16x128xf32, #tpu.memory_space<vmem>>, %arg14: memref<16x32xf32, #tpu.memory_space<vmem>>, %arg15: memref<16x32xf32, #tpu.memory_space<vmem>>, %arg16: memref<16x64xf32, #tpu.memory_space<vmem>>, %arg17: memref<16x64xf32, #tpu.memory_space<vmem>>, %arg18: memref<16x128xf32, #tpu.memory_space<vmem>>, %arg19: memref<16x64xf32, #tpu.memory_space<vmem>>, %arg20: memref<16x64xf32, #tpu.memory_space<vmem>>) attributes {dimension_semantics = [#tpu.dimension_semantics<parallel>, #tpu.dimension_semantics<arbitrary>], iteration_bounds = array<i64: 2, 2>, scalar_prefetch = 0 : i64, scratch_operands = 7 : i64, tpu.core_type = #tpu.core_type<tc>, window_params = [{transform_indices = @transform_0, window_bounds = array<i64: 1, 16, 32>}, {transform_indices = @transform_1, window_bounds = array<i64: 1, 1, 32>}, {transform_indices = @transform_2, window_bounds = array<i64: 1, 32, 128>}, {transform_indices = @transform_3, window_bounds = array<i64: 1, 4, 64>}, {transform_indices = @transform_4, window_bounds = array<i64: 1, 3, 64>}, {transform_indices = @transform_5, window_bounds = array<i64: 1, 64, 256>}, {transform_indices = @transform_6, window_bounds = array<i64: 1, 128, 64>}, {transform_indices = @transform_7, window_bounds = array<i64: 1, 16, 64>}, {transform_indices = @transform_8, window_bounds = array<i64: 1, 64, 32>}, {pipeline_mode = #tpu.pipeline_mode<synchronous>, transform_indices = @transform_9, window_bounds = array<i64: 1, 32>}, {pipeline_mode = #tpu.pipeline_mode<synchronous>, transform_indices = @transform_10, window_bounds = array<i64: 32, 128>}, {transform_indices = @transform_11, window_bounds = array<i64: 1, 16, 128>}]} {
    %c0_i32 = arith.constant 0 : i32
    %0 = arith.cmpi eq, %arg1, %c0_i32 : i32
    %1 = arith.extui %0 : i1 to i32
    %c0_i32_0 = arith.constant 0 : i32
    %2 = arith.cmpi ne, %1, %c0_i32_0 : i32
    scf.if %2 {
      %c0_78 = arith.constant 0 : index
      %c0_79 = arith.constant 0 : index
      %c0_80 = arith.constant 0 : index
      %138 = vector.load %arg2[%c0_78, %c0_79, %c0_80] : memref<1x16x32xf32, #tpu.memory_space<vmem>>, vector<1x16x32xf32>
      %139 = vector.shape_cast %138 : vector<1x16x32xf32> to vector<16x32xf32>
      %c0_81 = arith.constant 0 : index
      %c0_82 = arith.constant 0 : index
      %140 = vector.load %arg14[%c0_81, %c0_82] : memref<16x32xf32, #tpu.memory_space<vmem>>, vector<16x32xf32>
      tpu.vector_store %arg14[%c0_81, %c0_82], %139 {strides = array<i32>} : memref<16x32xf32, #tpu.memory_space<vmem>>, vector<16x32xf32>,
      %cst_83 = arith.constant 0.000000e+00 : f32
      %141 = vector.broadcast %cst_83 : f32 to vector<16x32xf32>
      %c0_84 = arith.constant 0 : index
      %c0_85 = arith.constant 0 : index
      %142 = vector.load %arg15[%c0_84, %c0_85] : memref<16x32xf32, #tpu.memory_space<vmem>>, vector<16x32xf32>
      tpu.vector_store %arg15[%c0_84, %c0_85], %141 {strides = array<i32>} : memref<16x32xf32, #tpu.memory_space<vmem>>, vector<16x32xf32>,
    } else {
    }
    %c0 = arith.constant 0 : index
    %c0_1 = arith.constant 0 : index
    %3 = vector.load %arg14[%c0, %c0_1] : memref<16x32xf32, #tpu.memory_space<vmem>>, vector<16x32xf32>
    %c0_2 = arith.constant 0 : index
    %c0_3 = arith.constant 0 : index
    %4 = vector.load %arg15[%c0_2, %c0_3] : memref<16x32xf32, #tpu.memory_space<vmem>>, vector<16x32xf32>
    %5 = arith.addf %3, %4 : vector<16x32xf32>
    %c0_4 = arith.constant 0 : index
    %c0_5 = arith.constant 0 : index
    %6 = vector.load %arg15[%c0_4, %c0_5] : memref<16x32xf32, #tpu.memory_space<vmem>>, vector<16x32xf32>
    tpu.vector_store %arg15[%c0_4, %c0_5], %5 {strides = array<i32>} : memref<16x32xf32, #tpu.memory_space<vmem>>, vector<16x32xf32>,
    %7 = arith.mulf %5, %5 : vector<16x32xf32>
    %cst = arith.constant dense<0.000000e+00> : vector<16xf32>
    %8 = vector.multi_reduction <add>, %7, %cst [1] : vector<16x32xf32> to vector<16xf32>
    %9 = vector.shape_cast %8 : vector<16xf32> to vector<16x1xf32>
    %cst_6 = arith.constant 3.200000e+01 : f32
    %10 = vector.broadcast %cst_6 : f32 to vector<16x1xf32>
    %11 = arith.divf %9, %10 : vector<16x1xf32>
    %cst_7 = arith.constant 9.99999974E-6 : f32
    %12 = vector.broadcast %cst_7 : f32 to vector<16x1xf32>
    %13 = arith.addf %11, %12 : vector<16x1xf32>
    %14 = math.rsqrt %13 : vector<16x1xf32>
    %15 = vector.broadcast %14 : vector<16x1xf32> to vector<16x32xf32>
    %16 = arith.mulf %5, %15 : vector<16x32xf32>
    %c0_8 = arith.constant 0 : index
    %c0_9 = arith.constant 0 : index
    %c0_10 = arith.constant 0 : index
    %17 = vector.load %arg3[%c0_8, %c0_9, %c0_10] : memref<1x1x32xf32, #tpu.memory_space<vmem>>, vector<1x1x32xf32>
    %18 = vector.shape_cast %17 : vector<1x1x32xf32> to vector<1x32xf32>
    %19 = vector.broadcast %18 : vector<1x32xf32> to vector<16x32xf32>
    %20 = arith.mulf %16, %19 : vector<16x32xf32>
    %21 = arith.truncf %20 : vector<16x32xf32> to vector<16x32xbf16>
    %c0_11 = arith.constant 0 : index
    %c0_12 = arith.constant 0 : index
    %c0_13 = arith.constant 0 : index
    %22 = vector.load %arg4[%c0_11, %c0_12, %c0_13] : memref<1x32x128xbf16, #tpu.memory_space<vmem>>, vector<1x32x128xbf16>
    %23 = vector.shape_cast %22 : vector<1x32x128xbf16> to vector<32x128xbf16>
    %cst_14 = arith.constant dense<0.000000e+00> : vector<16x128xf32>
    %24 = tpu.matmul %21, %23, %cst_14 {dimension_numbers = #tpu.dot_dimension_numbers<[1], [0], [0], [1], [0, 0, 1, 1], [], []>} : vector<16x32xbf16>, vector<32x128xbf16>, vector<16x128xf32> -> vector<16x128xf32>
    %25 = vector.extract_strided_slice %24 {offsets = [0, 0], sizes = [16, 64], strides = [1, 1]} : vector<16x128xf32> to vector<16x64xf32>
    %26 = vector.extract_strided_slice %24 {offsets = [0, 64], sizes = [16, 64], strides = [1, 1]} : vector<16x128xf32> to vector<16x64xf32>
    %27 = tpu.iota {dimensions = array<i32: 0>} : vector<16x1xi32>
    %c0_15 = arith.constant 0 : index
    %c0_16 = arith.constant 0 : index
    %c0_17 = arith.constant 0 : index
    %28 = vector.load %arg6[%c0_15, %c0_16, %c0_17] : memref<1x3x64xf32, #tpu.memory_space<vmem>>, vector<1x1x64xf32>
    %29 = vector.shape_cast %28 : vector<1x1x64xf32> to vector<1x64xf32>
    %c0_18 = arith.constant 0 : index
    %c3 = arith.constant 3 : index
    %c0_19 = arith.constant 0 : index
    %30 = vector.load %arg5[%c0_18, %c3, %c0_19] : memref<1x4x64xf32, #tpu.memory_space<vmem>>, vector<1x1x64xf32>
    %31 = vector.shape_cast %30 : vector<1x1x64xf32> to vector<1x64xf32>
    %32 = vector.broadcast %31 : vector<1x64xf32> to vector<16x64xf32>
    %33 = arith.mulf %25, %32 : vector<16x64xf32>
    %34 = vector.broadcast %29 : vector<1x64xf32> to vector<16x64xf32>
    %35 = arith.addf %34, %33 : vector<16x64xf32>
    %c1_i32 = arith.constant 1 : i32
    %36 = tpu.dynamic_rotate %25 by %c1_i32 dim 0 : vector<16x64xf32>, i32 -> vector<16x64xf32>
    %c1_i32_20 = arith.constant 1 : i32
    %37 = vector.broadcast %c1_i32_20 : i32 to vector<16x1xi32>
    %38 = arith.cmpi sge, %27, %37 : vector<16x1xi32>
    %cst_21 = arith.constant 0.000000e+00 : f32
    %39 = vector.shape_cast %38 : vector<16x1xi1> to vector<16x1xi1>
    %40 = vector.broadcast %39 : vector<16x1xi1> to vector<16x64xi1>
    %41 = vector.broadcast %cst_21 : f32 to vector<16x64xf32>
    %42 = arith.select %40, %36, %41 : vector<16x64xi1>, vector<16x64xf32>
    %c0_22 = arith.constant 0 : index
    %c2 = arith.constant 2 : index
    %c0_23 = arith.constant 0 : index
    %43 = vector.load %arg5[%c0_22, %c2, %c0_23] : memref<1x4x64xf32, #tpu.memory_space<vmem>>, vector<1x1x64xf32>
    %44 = vector.shape_cast %43 : vector<1x1x64xf32> to vector<1x64xf32>
    %45 = vector.broadcast %44 : vector<1x64xf32> to vector<16x64xf32>
    %46 = arith.mulf %42, %45 : vector<16x64xf32>
    %47 = arith.addf %35, %46 : vector<16x64xf32>
    %c2_i32 = arith.constant 2 : i32
    %48 = tpu.dynamic_rotate %25 by %c2_i32 dim 0 : vector<16x64xf32>, i32 -> vector<16x64xf32>
    %c2_i32_24 = arith.constant 2 : i32
    %49 = vector.broadcast %c2_i32_24 : i32 to vector<16x1xi32>
    %50 = arith.cmpi sge, %27, %49 : vector<16x1xi32>
    %cst_25 = arith.constant 0.000000e+00 : f32
    %51 = vector.shape_cast %50 : vector<16x1xi1> to vector<16x1xi1>
    %52 = vector.broadcast %51 : vector<16x1xi1> to vector<16x64xi1>
    %53 = vector.broadcast %cst_25 : f32 to vector<16x64xf32>
    %54 = arith.select %52, %48, %53 : vector<16x64xi1>, vector<16x64xf32>
    %c0_26 = arith.constant 0 : index
    %c1 = arith.constant 1 : index
    %c0_27 = arith.constant 0 : index
    %55 = vector.load %arg5[%c0_26, %c1, %c0_27] : memref<1x4x64xf32, #tpu.memory_space<vmem>>, vector<1x1x64xf32>
    %56 = vector.shape_cast %55 : vector<1x1x64xf32> to vector<1x64xf32>
    %57 = vector.broadcast %56 : vector<1x64xf32> to vector<16x64xf32>
    %58 = arith.mulf %54, %57 : vector<16x64xf32>
    %59 = arith.addf %47, %58 : vector<16x64xf32>
    %c3_i32 = arith.constant 3 : i32
    %60 = tpu.dynamic_rotate %25 by %c3_i32 dim 0 : vector<16x64xf32>, i32 -> vector<16x64xf32>
    %c3_i32_28 = arith.constant 3 : i32
    %61 = vector.broadcast %c3_i32_28 : i32 to vector<16x1xi32>
    %62 = arith.cmpi sge, %27, %61 : vector<16x1xi32>
    %cst_29 = arith.constant 0.000000e+00 : f32
    %63 = vector.shape_cast %62 : vector<16x1xi1> to vector<16x1xi1>
    %64 = vector.broadcast %63 : vector<16x1xi1> to vector<16x64xi1>
    %65 = vector.broadcast %cst_29 : f32 to vector<16x64xf32>
    %66 = arith.select %64, %60, %65 : vector<16x64xi1>, vector<16x64xf32>
    %c0_30 = arith.constant 0 : index
    %c0_31 = arith.constant 0 : index
    %c0_32 = arith.constant 0 : index
    %67 = vector.load %arg5[%c0_30, %c0_31, %c0_32] : memref<1x4x64xf32, #tpu.memory_space<vmem>>, vector<1x1x64xf32>
    %68 = vector.shape_cast %67 : vector<1x1x64xf32> to vector<1x64xf32>
    %69 = vector.broadcast %68 : vector<1x64xf32> to vector<16x64xf32>
    %70 = arith.mulf %66, %69 : vector<16x64xf32>
    %71 = arith.addf %59, %70 : vector<16x64xf32>
    %72 = arith.negf %71 : vector<16x64xf32>
    %73 = math.exp %72 : vector<16x64xf32>
    %cst_33 = arith.constant 1.000000e+00 : f32
    %74 = vector.broadcast %cst_33 : f32 to vector<16x64xf32>
    %75 = arith.addf %74, %73 : vector<16x64xf32>
    %76 = arith.divf %74, %75 : vector<16x64xf32>
    %77 = arith.mulf %71, %76 : vector<16x64xf32>
    %c0_34 = arith.constant 0 : index
    %c0_35 = arith.constant 0 : index
    %78 = vector.load %arg16[%c0_34, %c0_35] : memref<16x64xf32, #tpu.memory_space<vmem>>, vector<16x64xf32>
    tpu.vector_store %arg16[%c0_34, %c0_35], %77 {strides = array<i32>} : memref<16x64xf32, #tpu.memory_space<vmem>>, vector<16x64xf32>,
    %79 = arith.truncf %77 : vector<16x64xf32> to vector<16x64xbf16>
    %c0_36 = arith.constant 0 : index
    %c0_37 = arith.constant 0 : index
    %c0_38 = arith.constant 0 : index
    %80 = vector.load %arg7[%c0_36, %c0_37, %c0_38] : memref<1x64x256xbf16, #tpu.memory_space<vmem>>, vector<1x64x256xbf16>
    %81 = vector.shape_cast %80 : vector<1x64x256xbf16> to vector<64x256xbf16>
    %cst_39 = arith.constant dense<0.000000e+00> : vector<16x256xf32>
    %82 = tpu.matmul %79, %81, %cst_39 {dimension_numbers = #tpu.dot_dimension_numbers<[1], [0], [0], [1], [0, 0, 1, 1], [], []>} : vector<16x64xbf16>, vector<64x256xbf16>, vector<16x256xf32> -> vector<16x256xf32>
    %83 = vector.extract_strided_slice %82 {offsets = [0, 0], sizes = [16, 128], strides = [1, 1]} : vector<16x256xf32> to vector<16x128xf32>
    %84 = arith.truncf %83 : vector<16x128xf32> to vector<16x128xbf16>
    %c0_40 = arith.constant 0 : index
    %c0_41 = arith.constant 0 : index
    %c0_42 = arith.constant 0 : index
    %85 = vector.load %arg8[%c0_40, %c0_41, %c0_42] : memref<1x128x64xbf16, #tpu.memory_space<vmem>>, vector<1x128x64xbf16>
    %86 = vector.shape_cast %85 : vector<1x128x64xbf16> to vector<128x64xbf16>
    %cst_43 = arith.constant dense<0.000000e+00> : vector<16x64xf32>
    %87 = tpu.matmul %84, %86, %cst_43 {dimension_numbers = #tpu.dot_dimension_numbers<[1], [0], [0], [1], [0, 0, 1, 1], [], []>} : vector<16x128xbf16>, vector<128x64xbf16>, vector<16x64xf32> -> vector<16x64xf32>
    %c0_44 = arith.constant 0 : index
    %c1_45 = arith.constant 1 : index
    %c0_46 = arith.constant 0 : index
    %88 = vector.load %arg6[%c0_44, %c1_45, %c0_46] : memref<1x3x64xf32, #tpu.memory_space<vmem>>, vector<1x1x64xf32>
    %89 = vector.shape_cast %88 : vector<1x1x64xf32> to vector<1x64xf32>
    %90 = vector.broadcast %89 : vector<1x64xf32> to vector<16x64xf32>
    %91 = arith.addf %87, %90 : vector<16x64xf32>
    %cst_47 = arith.constant 0.000000e+00 : f32
    %92 = vector.broadcast %cst_47 : f32 to vector<16x64xf32>
    %93 = arith.maximumf %91, %92 : vector<16x64xf32>
    %94 = vector.broadcast %cst_47 : f32 to vector<16x64xf32>
    %95 = arith.subf %91, %94 : vector<16x64xf32>
    %96 = arith.cmpf one, %95, %95 : vector<16x64xf32>
    %97 = vector.broadcast %cst_47 : f32 to vector<16x64xf32>
    %98 = arith.addf %91, %97 : vector<16x64xf32>
    %99 = math.absf %95 : vector<16x64xf32>
    %cst_48 = arith.constant 0.000000e+00 : f32
    %100 = vector.broadcast %cst_48 : f32 to vector<16x64xf32>
    %101 = arith.subf %100, %99 : vector<16x64xf32>
    %102 = math.exp %101 : vector<16x64xf32>
    %103 = math.log1p %102 : vector<16x64xf32>
    %104 = arith.addf %93, %103 : vector<16x64xf32>
    %105 = arith.select %96, %98, %104 : vector<16x64xi1>, vector<16x64xf32>
    %c0_49 = arith.constant 0 : index
    %c0_50 = arith.constant 0 : index
    %106 = vector.load %arg17[%c0_49, %c0_50] : memref<16x64xf32, #tpu.memory_space<vmem>>, vector<16x64xf32>
    tpu.vector_store %arg17[%c0_49, %c0_50], %105 {strides = array<i32>} : memref<16x64xf32, #tpu.memory_space<vmem>>, vector<16x64xf32>,
    %107 = vector.extract_strided_slice %82 {offsets = [0, 128], sizes = [16, 128], strides = [1, 1]} : vector<16x256xf32> to vector<16x128xf32>
    %c0_51 = arith.constant 0 : index
    %c0_52 = arith.constant 0 : index
    %108 = vector.load %arg18[%c0_51, %c0_52] : memref<16x128xf32, #tpu.memory_space<vmem>>, vector<16x128xf32>
    tpu.vector_store %arg18[%c0_51, %c0_52], %107 {strides = array<i32>} : memref<16x128xf32, #tpu.memory_space<vmem>>, vector<16x128xf32>,
    %c0_53 = arith.constant 0 : index
    %c0_54 = arith.constant 0 : index
    %c0_55 = arith.constant 0 : index
    %109 = vector.load %arg9[%c0_53, %c0_54, %c0_55] : memref<1x16x64xf32, #tpu.memory_space<vmem>>, vector<1x16x64xf32>
    %110 = vector.shape_cast %109 : vector<1x16x64xf32> to vector<16x64xf32>
    %111 = math.exp %110 : vector<16x64xf32>
    %cst_56 = arith.constant 0.000000e+00 : f32
    %112 = vector.broadcast %cst_56 : f32 to vector<16x64xf32>
    %113 = arith.subf %112, %111 : vector<16x64xf32>
    %cst_57 = arith.constant 0.000000e+00 : f32
    %114 = vector.broadcast %cst_57 : f32 to vector<16x64xf32>
    %c0_58 = arith.constant 0 : index
    %c0_59 = arith.constant 0 : index
    %115 = vector.load %arg20[%c0_58, %c0_59] : memref<16x64xf32, #tpu.memory_space<vmem>>, vector<16x64xf32>
    tpu.vector_store %arg20[%c0_58, %c0_59], %114 {strides = array<i32>} : memref<16x64xf32, #tpu.memory_space<vmem>>, vector<16x64xf32>,
    %c0_i32_60 = arith.constant 0 : i32
    %c2_i32_61 = arith.constant 2 : i32
    %116 = arith.addi %c0_i32_60, %c2_i32_61 : i32
    %c1_i32_62 = arith.constant 1 : i32
    scf.for %arg21 = %c0_i32_60 to %116 step %c1_i32_62  : i32 {
      %c8_i32 = arith.constant 8 : i32
      %138 = arith.muli %arg21, %c8_i32 : i32
      %139 = tpu.assume_multiple %138, 8 : i32
      %140 = arith.index_cast %139 : i32 to index
      %c0_78 = arith.constant 0 : index
      %141 = vector.load %arg17[%140, %c0_78] : memref<16x64xf32, #tpu.memory_space<vmem>>, vector<8x64xf32>
      %142 = arith.index_cast %139 : i32 to index
      %c0_79 = arith.constant 0 : index
      %143 = vector.load %arg16[%142, %c0_79] : memref<16x64xf32, #tpu.memory_space<vmem>>, vector<8x64xf32>
      %144 = arith.mulf %141, %143 : vector<8x64xf32>
      %145 = arith.index_cast %139 : i32 to index
      %c0_80 = arith.constant 0 : index
      %146 = vector.load %arg18[%145, %c0_80] : memref<16x128xf32, #tpu.memory_space<vmem>>, vector<8x128xf32>
      %147 = tpu.transpose %146, [1, 0] : vector<8x128xf32> -> vector<128x8xf32>
      %c0_81 = arith.constant 0 : index
      %c0_82 = arith.constant 0 : index
      %148 = vector.load %arg20[%c0_81, %c0_82] : memref<16x64xf32, #tpu.memory_space<vmem>>, vector<16x64xf32>
      %149 = vector.extract_strided_slice %141 {offsets = [0, 0], sizes = [1, 64], strides = [1, 1]} : vector<8x64xf32> to vector<1x64xf32>
      %150 = vector.broadcast %149 : vector<1x64xf32> to vector<16x64xf32>
      %151 = arith.mulf %150, %113 : vector<16x64xf32>
      %152 = math.exp %151 : vector<16x64xf32>
      %153 = vector.extract_strided_slice %147 {offsets = [0, 0], sizes = [16, 1], strides = [1, 1]} : vector<128x8xf32> to vector<16x1xf32>
      %154 = vector.extract_strided_slice %144 {offsets = [0, 0], sizes = [1, 64], strides = [1, 1]} : vector<8x64xf32> to vector<1x64xf32>
      %155 = vector.broadcast %153 : vector<16x1xf32> to vector<16x64xf32>
      %156 = vector.broadcast %154 : vector<1x64xf32> to vector<16x64xf32>
      %157 = arith.mulf %155, %156 : vector<16x64xf32>
      %158 = arith.mulf %152, %148 : vector<16x64xf32>
      %159 = arith.addf %158, %157 : vector<16x64xf32>
      %160 = vector.extract_strided_slice %146 {offsets = [0, 16], sizes = [1, 16], strides = [1, 1]} : vector<8x128xf32> to vector<1x16xf32>
      %cst_83 = arith.constant dense<0.000000e+00> : vector<1x64xf32>
      %161 = tpu.matmul %160, %159, %cst_83 {dimension_numbers = #tpu.dot_dimension_numbers<[1], [0], [0], [1], [0, 0, 1, 1], [], []>} : vector<1x16xf32>, vector<16x64xf32>, vector<1x64xf32> -> vector<1x64xf32>
      %162 = vector.extract_strided_slice %141 {offsets = [1, 0], sizes = [1, 64], strides = [1, 1]} : vector<8x64xf32> to vector<1x64xf32>
      %163 = vector.broadcast %162 : vector<1x64xf32> to vector<16x64xf32>
      %164 = arith.mulf %163, %113 : vector<16x64xf32>
      %165 = math.exp %164 : vector<16x64xf32>
      %166 = vector.extract_strided_slice %147 {offsets = [0, 1], sizes = [16, 1], strides = [1, 1]} : vector<128x8xf32> to vector<16x1xf32>
      %167 = vector.extract_strided_slice %144 {offsets = [1, 0], sizes = [1, 64], strides = [1, 1]} : vector<8x64xf32> to vector<1x64xf32>
      %168 = vector.broadcast %166 : vector<16x1xf32> to vector<16x64xf32>
      %169 = vector.broadcast %167 : vector<1x64xf32> to vector<16x64xf32>
      %170 = arith.mulf %168, %169 : vector<16x64xf32>
      %171 = arith.mulf %165, %159 : vector<16x64xf32>
      %172 = arith.addf %171, %170 : vector<16x64xf32>
      %173 = vector.extract_strided_slice %146 {offsets = [1, 16], sizes = [1, 16], strides = [1, 1]} : vector<8x128xf32> to vector<1x16xf32>
      %cst_84 = arith.constant dense<0.000000e+00> : vector<1x64xf32>
      %174 = tpu.matmul %173, %172, %cst_84 {dimension_numbers = #tpu.dot_dimension_numbers<[1], [0], [0], [1], [0, 0, 1, 1], [], []>} : vector<1x16xf32>, vector<16x64xf32>, vector<1x64xf32> -> vector<1x64xf32>
      %175 = vector.extract_strided_slice %141 {offsets = [2, 0], sizes = [1, 64], strides = [1, 1]} : vector<8x64xf32> to vector<1x64xf32>
      %176 = vector.broadcast %175 : vector<1x64xf32> to vector<16x64xf32>
      %177 = arith.mulf %176, %113 : vector<16x64xf32>
      %178 = math.exp %177 : vector<16x64xf32>
      %179 = vector.extract_strided_slice %147 {offsets = [0, 2], sizes = [16, 1], strides = [1, 1]} : vector<128x8xf32> to vector<16x1xf32>
      %180 = vector.extract_strided_slice %144 {offsets = [2, 0], sizes = [1, 64], strides = [1, 1]} : vector<8x64xf32> to vector<1x64xf32>
      %181 = vector.broadcast %179 : vector<16x1xf32> to vector<16x64xf32>
      %182 = vector.broadcast %180 : vector<1x64xf32> to vector<16x64xf32>
      %183 = arith.mulf %181, %182 : vector<16x64xf32>
      %184 = arith.mulf %178, %172 : vector<16x64xf32>
      %185 = arith.addf %184, %183 : vector<16x64xf32>
      %186 = vector.extract_strided_slice %146 {offsets = [2, 16], sizes = [1, 16], strides = [1, 1]} : vector<8x128xf32> to vector<1x16xf32>
      %cst_85 = arith.constant dense<0.000000e+00> : vector<1x64xf32>
      %187 = tpu.matmul %186, %185, %cst_85 {dimension_numbers = #tpu.dot_dimension_numbers<[1], [0], [0], [1], [0, 0, 1, 1], [], []>} : vector<1x16xf32>, vector<16x64xf32>, vector<1x64xf32> -> vector<1x64xf32>
      %188 = vector.extract_strided_slice %141 {offsets = [3, 0], sizes = [1, 64], strides = [1, 1]} : vector<8x64xf32> to vector<1x64xf32>
      %189 = vector.broadcast %188 : vector<1x64xf32> to vector<16x64xf32>
      %190 = arith.mulf %189, %113 : vector<16x64xf32>
      %191 = math.exp %190 : vector<16x64xf32>
      %192 = vector.extract_strided_slice %147 {offsets = [0, 3], sizes = [16, 1], strides = [1, 1]} : vector<128x8xf32> to vector<16x1xf32>
      %193 = vector.extract_strided_slice %144 {offsets = [3, 0], sizes = [1, 64], strides = [1, 1]} : vector<8x64xf32> to vector<1x64xf32>
      %194 = vector.broadcast %192 : vector<16x1xf32> to vector<16x64xf32>
      %195 = vector.broadcast %193 : vector<1x64xf32> to vector<16x64xf32>
      %196 = arith.mulf %194, %195 : vector<16x64xf32>
      %197 = arith.mulf %191, %185 : vector<16x64xf32>
      %198 = arith.addf %197, %196 : vector<16x64xf32>
      %199 = vector.extract_strided_slice %146 {offsets = [3, 16], sizes = [1, 16], strides = [1, 1]} : vector<8x128xf32> to vector<1x16xf32>
      %cst_86 = arith.constant dense<0.000000e+00> : vector<1x64xf32>
      %200 = tpu.matmul %199, %198, %cst_86 {dimension_numbers = #tpu.dot_dimension_numbers<[1], [0], [0], [1], [0, 0, 1, 1], [], []>} : vector<1x16xf32>, vector<16x64xf32>, vector<1x64xf32> -> vector<1x64xf32>
      %201 = vector.extract_strided_slice %141 {offsets = [4, 0], sizes = [1, 64], strides = [1, 1]} : vector<8x64xf32> to vector<1x64xf32>
      %202 = vector.broadcast %201 : vector<1x64xf32> to vector<16x64xf32>
      %203 = arith.mulf %202, %113 : vector<16x64xf32>
      %204 = math.exp %203 : vector<16x64xf32>
      %205 = vector.extract_strided_slice %147 {offsets = [0, 4], sizes = [16, 1], strides = [1, 1]} : vector<128x8xf32> to vector<16x1xf32>
      %206 = vector.extract_strided_slice %144 {offsets = [4, 0], sizes = [1, 64], strides = [1, 1]} : vector<8x64xf32> to vector<1x64xf32>
      %207 = vector.broadcast %205 : vector<16x1xf32> to vector<16x64xf32>
      %208 = vector.broadcast %206 : vector<1x64xf32> to vector<16x64xf32>
      %209 = arith.mulf %207, %208 : vector<16x64xf32>
      %210 = arith.mulf %204, %198 : vector<16x64xf32>
      %211 = arith.addf %210, %209 : vector<16x64xf32>
      %212 = vector.extract_strided_slice %146 {offsets = [4, 16], sizes = [1, 16], strides = [1, 1]} : vector<8x128xf32> to vector<1x16xf32>
      %cst_87 = arith.constant dense<0.000000e+00> : vector<1x64xf32>
      %213 = tpu.matmul %212, %211, %cst_87 {dimension_numbers = #tpu.dot_dimension_numbers<[1], [0], [0], [1], [0, 0, 1, 1], [], []>} : vector<1x16xf32>, vector<16x64xf32>, vector<1x64xf32> -> vector<1x64xf32>
      %214 = vector.extract_strided_slice %141 {offsets = [5, 0], sizes = [1, 64], strides = [1, 1]} : vector<8x64xf32> to vector<1x64xf32>
      %215 = vector.broadcast %214 : vector<1x64xf32> to vector<16x64xf32>
      %216 = arith.mulf %215, %113 : vector<16x64xf32>
      %217 = math.exp %216 : vector<16x64xf32>
      %218 = vector.extract_strided_slice %147 {offsets = [0, 5], sizes = [16, 1], strides = [1, 1]} : vector<128x8xf32> to vector<16x1xf32>
      %219 = vector.extract_strided_slice %144 {offsets = [5, 0], sizes = [1, 64], strides = [1, 1]} : vector<8x64xf32> to vector<1x64xf32>
      %220 = vector.broadcast %218 : vector<16x1xf32> to vector<16x64xf32>
      %221 = vector.broadcast %219 : vector<1x64xf32> to vector<16x64xf32>
      %222 = arith.mulf %220, %221 : vector<16x64xf32>
      %223 = arith.mulf %217, %211 : vector<16x64xf32>
      %224 = arith.addf %223, %222 : vector<16x64xf32>
      %225 = vector.extract_strided_slice %146 {offsets = [5, 16], sizes = [1, 16], strides = [1, 1]} : vector<8x128xf32> to vector<1x16xf32>
      %cst_88 = arith.constant dense<0.000000e+00> : vector<1x64xf32>
      %226 = tpu.matmul %225, %224, %cst_88 {dimension_numbers = #tpu.dot_dimension_numbers<[1], [0], [0], [1], [0, 0, 1, 1], [], []>} : vector<1x16xf32>, vector<16x64xf32>, vector<1x64xf32> -> vector<1x64xf32>
      %227 = vector.extract_strided_slice %141 {offsets = [6, 0], sizes = [1, 64], strides = [1, 1]} : vector<8x64xf32> to vector<1x64xf32>
      %228 = vector.broadcast %227 : vector<1x64xf32> to vector<16x64xf32>
      %229 = arith.mulf %228, %113 : vector<16x64xf32>
      %230 = math.exp %229 : vector<16x64xf32>
      %231 = vector.extract_strided_slice %147 {offsets = [0, 6], sizes = [16, 1], strides = [1, 1]} : vector<128x8xf32> to vector<16x1xf32>
      %232 = vector.extract_strided_slice %144 {offsets = [6, 0], sizes = [1, 64], strides = [1, 1]} : vector<8x64xf32> to vector<1x64xf32>
      %233 = vector.broadcast %231 : vector<16x1xf32> to vector<16x64xf32>
      %234 = vector.broadcast %232 : vector<1x64xf32> to vector<16x64xf32>
      %235 = arith.mulf %233, %234 : vector<16x64xf32>
      %236 = arith.mulf %230, %224 : vector<16x64xf32>
      %237 = arith.addf %236, %235 : vector<16x64xf32>
      %238 = vector.extract_strided_slice %146 {offsets = [6, 16], sizes = [1, 16], strides = [1, 1]} : vector<8x128xf32> to vector<1x16xf32>
      %cst_89 = arith.constant dense<0.000000e+00> : vector<1x64xf32>
      %239 = tpu.matmul %238, %237, %cst_89 {dimension_numbers = #tpu.dot_dimension_numbers<[1], [0], [0], [1], [0, 0, 1, 1], [], []>} : vector<1x16xf32>, vector<16x64xf32>, vector<1x64xf32> -> vector<1x64xf32>
      %240 = vector.extract_strided_slice %141 {offsets = [7, 0], sizes = [1, 64], strides = [1, 1]} : vector<8x64xf32> to vector<1x64xf32>
      %241 = vector.broadcast %240 : vector<1x64xf32> to vector<16x64xf32>
      %242 = arith.mulf %241, %113 : vector<16x64xf32>
      %243 = math.exp %242 : vector<16x64xf32>
      %244 = vector.extract_strided_slice %147 {offsets = [0, 7], sizes = [16, 1], strides = [1, 1]} : vector<128x8xf32> to vector<16x1xf32>
      %245 = vector.extract_strided_slice %144 {offsets = [7, 0], sizes = [1, 64], strides = [1, 1]} : vector<8x64xf32> to vector<1x64xf32>
      %246 = vector.broadcast %244 : vector<16x1xf32> to vector<16x64xf32>
      %247 = vector.broadcast %245 : vector<1x64xf32> to vector<16x64xf32>
      %248 = arith.mulf %246, %247 : vector<16x64xf32>
      %249 = arith.mulf %243, %237 : vector<16x64xf32>
      %250 = arith.addf %249, %248 : vector<16x64xf32>
      %251 = vector.extract_strided_slice %146 {offsets = [7, 16], sizes = [1, 16], strides = [1, 1]} : vector<8x128xf32> to vector<1x16xf32>
      %cst_90 = arith.constant dense<0.000000e+00> : vector<1x64xf32>
      %252 = tpu.matmul %251, %250, %cst_90 {dimension_numbers = #tpu.dot_dimension_numbers<[1], [0], [0], [1], [0, 0, 1, 1], [], []>} : vector<1x16xf32>, vector<16x64xf32>, vector<1x64xf32> -> vector<1x64xf32>
      %c0_91 = arith.constant 0 : index
      %c0_92 = arith.constant 0 : index
      %253 = vector.load %arg20[%c0_91, %c0_92] : memref<16x64xf32, #tpu.memory_space<vmem>>, vector<16x64xf32>
      tpu.vector_store %arg20[%c0_91, %c0_92], %250 {strides = array<i32>} : memref<16x64xf32, #tpu.memory_space<vmem>>, vector<16x64xf32>,
      %254 = tpu.concatenate %161, %174, %187, %200, %213, %226, %239, %252 in 0 : vector<1x64xf32>, vector<1x64xf32>, vector<1x64xf32>, vector<1x64xf32>, vector<1x64xf32>, vector<1x64xf32>, vector<1x64xf32>, vector<1x64xf32> -> vector<8x64xf32>
      %255 = arith.index_cast %139 : i32 to index
      %c0_93 = arith.constant 0 : index
      %256 = vector.load %arg19[%255, %c0_93] : memref<16x64xf32, #tpu.memory_space<vmem>>, vector<8x64xf32>
      tpu.vector_store %arg19[%255, %c0_93], %254 {strides = array<i32>} : memref<16x64xf32, #tpu.memory_space<vmem>>, vector<8x64xf32>,
    }
    %c2_i32_63 = arith.constant 2 : i32
    %c0_64 = arith.constant 0 : index
    %c0_65 = arith.constant 0 : index
    %117 = vector.load %arg19[%c0_64, %c0_65] : memref<16x64xf32, #tpu.memory_space<vmem>>, vector<16x64xf32>
    %c0_66 = arith.constant 0 : index
    %c2_67 = arith.constant 2 : index
    %c0_68 = arith.constant 0 : index
    %118 = vector.load %arg6[%c0_66, %c2_67, %c0_68] : memref<1x3x64xf32, #tpu.memory_space<vmem>>, vector<1x1x64xf32>
    %119 = vector.shape_cast %118 : vector<1x1x64xf32> to vector<1x64xf32>
    %120 = vector.broadcast %119 : vector<1x64xf32> to vector<16x64xf32>
    %121 = arith.mulf %77, %120 : vector<16x64xf32>
    %122 = arith.addf %117, %121 : vector<16x64xf32>
    %123 = arith.negf %26 : vector<16x64xf32>
    %124 = math.exp %123 : vector<16x64xf32>
    %cst_69 = arith.constant 1.000000e+00 : f32
    %125 = vector.broadcast %cst_69 : f32 to vector<16x64xf32>
    %126 = arith.addf %125, %124 : vector<16x64xf32>
    %127 = arith.divf %125, %126 : vector<16x64xf32>
    %128 = arith.mulf %26, %127 : vector<16x64xf32>
    %129 = arith.mulf %122, %128 : vector<16x64xf32>
    %130 = arith.truncf %129 : vector<16x64xf32> to vector<16x64xbf16>
    %c0_70 = arith.constant 0 : index
    %c0_71 = arith.constant 0 : index
    %c0_72 = arith.constant 0 : index
    %131 = vector.load %arg10[%c0_70, %c0_71, %c0_72] : memref<1x64x32xbf16, #tpu.memory_space<vmem>>, vector<1x64x32xbf16>
    %132 = vector.shape_cast %131 : vector<1x64x32xbf16> to vector<64x32xbf16>
    %cst_73 = arith.constant dense<0.000000e+00> : vector<16x32xf32>
    %133 = tpu.matmul %130, %132, %cst_73 {dimension_numbers = #tpu.dot_dimension_numbers<[1], [0], [0], [1], [0, 0, 1, 1], [], []>} : vector<16x64xbf16>, vector<64x32xbf16>, vector<16x32xf32> -> vector<16x32xf32>
    %c0_74 = arith.constant 0 : index
    %c0_75 = arith.constant 0 : index
    %134 = vector.load %arg14[%c0_74, %c0_75] : memref<16x32xf32, #tpu.memory_space<vmem>>, vector<16x32xf32>
    tpu.vector_store %arg14[%c0_74, %c0_75], %133 {strides = array<i32>} : memref<16x32xf32, #tpu.memory_space<vmem>>, vector<16x32xf32>,
    %c1_i32_76 = arith.constant 1 : i32
    %135 = arith.cmpi eq, %arg1, %c1_i32_76 : i32
    %136 = arith.extui %135 : i1 to i32
    %c0_i32_77 = arith.constant 0 : i32
    %137 = arith.cmpi ne, %136, %c0_i32_77 : i32
    scf.if %137 {
      %138 = arith.addf %133, %5 : vector<16x32xf32>
      %139 = arith.mulf %138, %138 : vector<16x32xf32>
      %cst_78 = arith.constant dense<0.000000e+00> : vector<16xf32>
      %140 = vector.multi_reduction <add>, %139, %cst_78 [1] : vector<16x32xf32> to vector<16xf32>
      %141 = vector.shape_cast %140 : vector<16xf32> to vector<16x1xf32>
      %cst_79 = arith.constant 3.200000e+01 : f32
      %142 = vector.broadcast %cst_79 : f32 to vector<16x1xf32>
      %143 = arith.divf %141, %142 : vector<16x1xf32>
      %cst_80 = arith.constant 9.99999974E-6 : f32
      %144 = vector.broadcast %cst_80 : f32 to vector<16x1xf32>
      %145 = arith.addf %143, %144 : vector<16x1xf32>
      %146 = math.rsqrt %145 : vector<16x1xf32>
      %147 = vector.broadcast %146 : vector<16x1xf32> to vector<16x32xf32>
      %148 = arith.mulf %138, %147 : vector<16x32xf32>
      %c0_81 = arith.constant 0 : index
      %c0_82 = arith.constant 0 : index
      %149 = vector.load %arg11[%c0_81, %c0_82] : memref<1x32xf32, #tpu.memory_space<vmem>>, vector<1x32xf32>
      %150 = vector.broadcast %149 : vector<1x32xf32> to vector<16x32xf32>
      %151 = arith.mulf %148, %150 : vector<16x32xf32>
      %152 = arith.truncf %151 : vector<16x32xf32> to vector<16x32xbf16>
      %c0_83 = arith.constant 0 : index
      %c0_84 = arith.constant 0 : index
      %153 = vector.load %arg12[%c0_83, %c0_84] : memref<32x128xbf16, #tpu.memory_space<vmem>>, vector<32x128xbf16>
      %cst_85 = arith.constant dense<0.000000e+00> : vector<16x128xf32>
      %154 = tpu.matmul %152, %153, %cst_85 {dimension_numbers = #tpu.dot_dimension_numbers<[1], [0], [0], [1], [0, 0, 1, 1], [], []>} : vector<16x32xbf16>, vector<32x128xbf16>, vector<16x128xf32> -> vector<16x128xf32>
      %c0_86 = arith.constant 0 : index
      %c0_87 = arith.constant 0 : index
      %c0_88 = arith.constant 0 : index
      %155 = vector.load %arg13[%c0_86, %c0_87, %c0_88] : memref<1x16x128xf32, #tpu.memory_space<vmem>>, vector<1x16x128xf32>
      %156 = vector.shape_cast %155 : vector<1x16x128xf32> to vector<16x128xf32>
      %157 = vector.shape_cast %154 : vector<16x128xf32> to vector<1x16x128xf32>
      tpu.vector_store %arg13[%c0_86, %c0_87, %c0_88], %157 {strides = array<i32>} : memref<1x16x128xf32, #tpu.memory_space<vmem>>, vector<1x16x128xf32>,
    } else {
    }
    return
  }
  func.func @transform_0(%arg0: i32, %arg1: i32) -> (i32, i32, i32) {
    %c0_i32 = arith.constant 0 : i32
    %c0_i32_0 = arith.constant 0 : i32
    %c0_i32_1 = arith.constant 0 : i32
    return %arg0, %c0_i32, %c0_i32_0 : i32, i32, i32
  }
  func.func @transform_1(%arg0: i32, %arg1: i32) -> (i32, i32, i32) {
    %c0_i32 = arith.constant 0 : i32
    %c0_i32_0 = arith.constant 0 : i32
    %c0_i32_1 = arith.constant 0 : i32
    return %arg1, %c0_i32, %c0_i32_0 : i32, i32, i32
  }
  func.func @transform_2(%arg0: i32, %arg1: i32) -> (i32, i32, i32) {
    %c0_i32 = arith.constant 0 : i32
    %c0_i32_0 = arith.constant 0 : i32
    %c0_i32_1 = arith.constant 0 : i32
    return %arg1, %c0_i32, %c0_i32_0 : i32, i32, i32
  }
  func.func @transform_3(%arg0: i32, %arg1: i32) -> (i32, i32, i32) {
    %c0_i32 = arith.constant 0 : i32
    %c0_i32_0 = arith.constant 0 : i32
    %c0_i32_1 = arith.constant 0 : i32
    return %arg1, %c0_i32, %c0_i32_0 : i32, i32, i32
  }
  func.func @transform_4(%arg0: i32, %arg1: i32) -> (i32, i32, i32) {
    %c0_i32 = arith.constant 0 : i32
    %c0_i32_0 = arith.constant 0 : i32
    %c0_i32_1 = arith.constant 0 : i32
    return %arg1, %c0_i32, %c0_i32_0 : i32, i32, i32
  }
  func.func @transform_5(%arg0: i32, %arg1: i32) -> (i32, i32, i32) {
    %c0_i32 = arith.constant 0 : i32
    %c0_i32_0 = arith.constant 0 : i32
    %c0_i32_1 = arith.constant 0 : i32
    return %arg1, %c0_i32, %c0_i32_0 : i32, i32, i32
  }
  func.func @transform_6(%arg0: i32, %arg1: i32) -> (i32, i32, i32) {
    %c0_i32 = arith.constant 0 : i32
    %c0_i32_0 = arith.constant 0 : i32
    %c0_i32_1 = arith.constant 0 : i32
    return %arg1, %c0_i32, %c0_i32_0 : i32, i32, i32
  }
  func.func @transform_7(%arg0: i32, %arg1: i32) -> (i32, i32, i32) {
    %c0_i32 = arith.constant 0 : i32
    %c0_i32_0 = arith.constant 0 : i32
    %c0_i32_1 = arith.constant 0 : i32
    return %arg1, %c0_i32, %c0_i32_0 : i32, i32, i32
  }
  func.func @transform_8(%arg0: i32, %arg1: i32) -> (i32, i32, i32) {
    %c0_i32 = arith.constant 0 : i32
    %c0_i32_0 = arith.constant 0 : i32
    %c0_i32_1 = arith.constant 0 : i32
    return %arg1, %c0_i32, %c0_i32_0 : i32, i32, i32
  }
  func.func @transform_9(%arg0: i32, %arg1: i32) -> (i32, i32) {
    %c0_i32 = arith.constant 0 : i32
    %c0_i32_0 = arith.constant 0 : i32
    %c0_i32_1 = arith.constant 0 : i32
    return %c0_i32, %c0_i32_0 : i32, i32
  }
  func.func @transform_10(%arg0: i32, %arg1: i32) -> (i32, i32) {
    %c0_i32 = arith.constant 0 : i32
    %c0_i32_0 = arith.constant 0 : i32
    %c0_i32_1 = arith.constant 0 : i32
    return %c0_i32, %c0_i32_0 : i32, i32
  }
  func.func @transform_11(%arg0: i32, %arg1: i32) -> (i32, i32, i32) {
    %c0_i32 = arith.constant 0 : i32
    %c0_i32_0 = arith.constant 0 : i32
    %c0_i32_1 = arith.constant 0 : i32
    return %arg0, %c0_i32, %c0_i32_0 : i32, i32, i32
  }
}

</mosaic_0001>

<llo_original>
// kernel: mamba_for_ner_forward.1
$region0: #{mamba_for_ner_forward.1}
  #allocation0 [shape = 'u32[]', space=smem, size = 0x4, offset = 0x4, fixed_abs, tag = 'smem constant byte address 0x4 - core index']
  #allocation1 [shape = 'u32[144,128]{1,0:T(1,128)}', space=vmem, size = 0x12000, scoped, tag = 'internal scratch']
  #allocation2 [shape = 'f32[16,32]{1,0:T(8,128)}', space=vmem, size = 0x2000, scoped, tag = 'scratch operand']
  #allocation3 [shape = 'f32[16,32]{1,0:T(8,128)}', space=vmem, size = 0x2000, scoped, tag = 'scratch operand']
  #allocation4 [shape = 'f32[16,64]{1,0:T(8,128)}', space=vmem, size = 0x2000, scoped, tag = 'scratch operand']
  #allocation5 [shape = 'f32[16,64]{1,0:T(8,128)}', space=vmem, size = 0x2000, scoped, tag = 'scratch operand']
  #allocation6 [shape = 'f32[16,128]{1,0:T(8,128)}', space=vmem, size = 0x2000, scoped, tag = 'scratch operand']
  #allocation7 [shape = 'f32[16,64]{1,0:T(8,128)}', space=vmem, size = 0x2000, scoped, tag = 'scratch operand']
  #allocation8 [shape = 'f32[16,64]{1,0:T(8,128)}', space=vmem, size = 0x2000, scoped, tag = 'scratch operand']
  %s0 = inlined_call_operand.vmem [shape: f32[2,16,32], index: 0, kind: input, shape index: {}]
  %s1 = inlined_call_operand.vmem [shape: f32[2,1,32], index: 1, kind: input, shape index: {}]
  %s2 = inlined_call_operand.vmem [shape: bf16[2,32,128], index: 2, kind: input, shape index: {}]
  %s3 = inlined_call_operand.vmem [shape: f32[2,4,64], index: 3, kind: input, shape index: {}]
  %s4 = inlined_call_operand.vmem [shape: f32[2,3,64], index: 4, kind: input, shape index: {}]
  %s5 = inlined_call_operand.vmem [shape: bf16[2,64,256], index: 5, kind: input, shape index: {}]
  %s6 = inlined_call_operand.vmem [shape: bf16[2,128,64], index: 6, kind: input, shape index: {}]
  %s7 = inlined_call_operand.vmem [shape: f32[2,16,64], index: 7, kind: input, shape index: {}]
  %s8 = inlined_call_operand.vmem [shape: bf16[2,64,32], index: 8, kind: input, shape index: {}]
  %s9 = inlined_call_operand.vmem [shape: f32[1,32], index: 9, kind: input, shape index: {}]
  %s10 = inlined_call_operand.vmem [shape: bf16[32,128], index: 10, kind: input, shape index: {}]
  %s11 = inlined_call_operand.vmem [shape: f32[2,16,128], index: 11, kind: output, shape index: {}]
  %s12 = sld [smem:[#allocation0]]
  $region92: #{mamba_for_ner_forward.1} parent=0
    _
  %s14 = ssub.s32 1, %s12
  %s15 = scalar_select 0, %s14, %s12
  loop: start=0, step=1, limit=6
  $region2: #{mamba_for_ner_forward.1} parent=0 // loop_pre_header
    _
  $region3: #{mamba_for_ner_forward.1} parent=0 // loop_header
    %s17 = sphi 0, %s21
    %p18 = scmp.ge.s32.totalorder %s17, 6
    %s24 = sphi 0, %s36
    %s25 = sphi 0, %s32
    %s26 = sphi 0, %s24
    %s27 = sphi 0, %s25
    %s28 = sphi 0, %s26
    %s29 = sphi 0, %s27
    %s39 = sphi 0, %s41
    %s42 = sphi 0, %s39
    %s43 = sphi 0, %s42
    %s59 = sphi 0, %s43
    %s65 = sphi 0, %s67
    %s68 = sphi 0, %s65
    %s69 = sphi 0, %s68
    %s85 = sphi 0, %s69
    %s91 = sphi 0, %s93
    %s94 = sphi 0, %s91
    %s95 = sphi 0, %s94
    %s111 = sphi 0, %s95
    %s117 = sphi 0, %s119
    %s120 = sphi 0, %s117
    %s121 = sphi 0, %s120
    %s137 = sphi 0, %s121
    %s143 = sphi 0, %s145
    %s146 = sphi 0, %s143
    %s147 = sphi 0, %s146
    %s163 = sphi 0, %s147
    %s169 = sphi 0, %s171
    %s172 = sphi 0, %s169
    %s173 = sphi 0, %s172
    %s189 = sphi 0, %s173
    %s195 = sphi 0, %s197
    %s198 = sphi 0, %s195
    %s199 = sphi 0, %s198
    %s215 = sphi 0, %s199
    %s221 = sphi 0, %s223
    %s224 = sphi 0, %s221
    %s225 = sphi 0, %s224
    %s241 = sphi 0, %s225
    %s247 = sphi 0, %s249
    %s250 = sphi 0, %s247
    %s251 = sphi 0, %s250
    %s267 = sphi 0, %s251
    %s271 = sphi 0, %s271
    %s273 = sphi 0, %s271
    %s274 = sphi 0, %s273
    %s288 = sphi 0, %s274
    %s292 = sphi 0, %s292
    %s294 = sphi 0, %s292
    %s295 = sphi 0, %s294
    %s309 = sphi 0, %s295
    %s315 = sphi 0, %s317
    %s318 = sphi 0, %s315
    %s319 = sphi 0, %s318
    %s335 = sphi 0, %s319
  $region4: #{mamba_for_ner_forward.1} parent=0 // loop_header_branch
    %20 = sbr.rel (%p18) target = $region8
  $region5: #{mamba_for_ner_forward.1} parent=0 // loop_body
    %s22 = ssub.s32 %s17, 1
    %s23 = ssub.s32 %s17, 2
    %s30 = sadd.s32 1, %s25
    %p31 = scmp.ge.s32.totalorder %s30, 2
    %s32 = scalar_select %p31, 0, %s30
    %s33 = sadd.s32 1, %s24
    %s34 = scalar_select %p31, %s33, %s24
    %p35 = scmp.ge.s32.totalorder %s34, 2
    %s36 = scalar_select %p35, 0, %s34
    %s37 = ssub.s32 %s24, %s36
    %p38 = scmp.eq.s32.totalorder %s37, 0
    %s40 = sadd.s32 %s39, 1
    %s41 = scalar_select %p38, %s39, %s40
    %p44 = pneg %p38
    %p45 = scmp.eq.s32.totalorder %s17, 3
    %p46 = por %p44, %p45
    %p47 = scmp.ne.s32.totalorder %s39, %s42
    %p48 = scmp.eq.s32.totalorder %s17, 0
    %p49 = por %p47, %p48
    %p50 = scmp.ne.s32.totalorder %s39, %s42
    %p51 = scmp.eq.s32.totalorder %s22, 3
    %p52 = por %p50, %p51
    %p53 = scmp.ne.s32.totalorder %s42, %s43
    %p54 = scmp.eq.s32.totalorder %s22, 0
    %p55 = por %p53, %p54
    %p56 = scmp.ne.s32.totalorder %s42, %s43
    %p57 = scmp.eq.s32.totalorder %s23, 3
    %p58 = por %p56, %p57
    %p60 = scmp.ne.s32.totalorder %s43, %s59
    %p61 = scmp.eq.s32.totalorder %s23, 0
    %p62 = por %p60, %p61
    %s63 = ssub.s32 %s25, %s32
    %p64 = scmp.eq.s32.totalorder %s63, 0
    %s66 = sadd.s32 %s65, 1
    %s67 = scalar_select %p64, %s65, %s66
    %p70 = pneg %p64
    %p71 = scmp.eq.s32.totalorder %s17, 3
    %p72 = por %p70, %p71
    %p73 = scmp.ne.s32.totalorder %s65, %s68
    %p74 = scmp.eq.s32.totalorder %s17, 0
    %p75 = por %p73, %p74
    %p76 = scmp.ne.s32.totalorder %s65, %s68
    %p77 = scmp.eq.s32.totalorder %s22, 3
    %p78 = por %p76, %p77
    %p79 = scmp.ne.s32.totalorder %s68, %s69
    %p80 = scmp.eq.s32.totalorder %s22, 0
    %p81 = por %p79, %p80
    %p82 = scmp.ne.s32.totalorder %s68, %s69
    %p83 = scmp.eq.s32.totalorder %s23, 3
    %p84 = por %p82, %p83
    %p86 = scmp.ne.s32.totalorder %s69, %s85
    %p87 = scmp.eq.s32.totalorder %s23, 0
    %p88 = por %p86, %p87
    %s89 = ssub.s32 %s25, %s32
    %p90 = scmp.eq.s32.totalorder %s89, 0
    %s92 = sadd.s32 %s91, 1
    %s93 = scalar_select %p90, %s91, %s92
    %p96 = pneg %p90
    %p97 = scmp.eq.s32.totalorder %s17, 3
    %p98 = por %p96, %p97
    %p99 = scmp.ne.s32.totalorder %s91, %s94
    %p100 = scmp.eq.s32.totalorder %s17, 0
    %p101 = por %p99, %p100
    %p102 = scmp.ne.s32.totalorder %s91, %s94
    %p103 = scmp.eq.s32.totalorder %s22, 3
    %p104 = por %p102, %p103
    %p105 = scmp.ne.s32.totalorder %s94, %s95
    %p106 = scmp.eq.s32.totalorder %s22, 0
    %p107 = por %p105, %p106
    %p108 = scmp.ne.s32.totalorder %s94, %s95
    %p109 = scmp.eq.s32.totalorder %s23, 3
    %p110 = por %p108, %p109
    %p112 = scmp.ne.s32.totalorder %s95, %s111
    %p113 = scmp.eq.s32.totalorder %s23, 0
    %p114 = por %p112, %p113
    %s115 = ssub.s32 %s25, %s32
    %p116 = scmp.eq.s32.totalorder %s115, 0
    %s118 = sadd.s32 %s117, 1
    %s119 = scalar_select %p116, %s117, %s118
    %p122 = pneg %p116
    %p123 = scmp.eq.s32.totalorder %s17, 3
    %p124 = por %p122, %p123
    %p125 = scmp.ne.s32.totalorder %s117, %s120
    %p126 = scmp.eq.s32.totalorder %s17, 0
    %p127 = por %p125, %p126
    %p128 = scmp.ne.s32.totalorder %s117, %s120
    %p129 = scmp.eq.s32.totalorder %s22, 3
    %p130 = por %p128, %p129
    %p131 = scmp.ne.s32.totalorder %s120, %s121
    %p132 = scmp.eq.s32.totalorder %s22, 0
    %p133 = por %p131, %p132
    %p134 = scmp.ne.s32.totalorder %s120, %s121
    %p135 = scmp.eq.s32.totalorder %s23, 3
    %p136 = por %p134, %p135
    %p138 = scmp.ne.s32.totalorder %s121, %s137
    %p139 = scmp.eq.s32.totalorder %s23, 0
    %p140 = por %p138, %p139
    %s141 = ssub.s32 %s25, %s32
    %p142 = scmp.eq.s32.totalorder %s141, 0
    %s144 = sadd.s32 %s143, 1
    %s145 = scalar_select %p142, %s143, %s144
    %p148 = pneg %p142
    %p149 = scmp.eq.s32.totalorder %s17, 3
    %p150 = por %p148, %p149
    %p151 = scmp.ne.s32.totalorder %s143, %s146
    %p152 = scmp.eq.s32.totalorder %s17, 0
    %p153 = por %p151, %p152
    %p154 = scmp.ne.s32.totalorder %s143, %s146
    %p155 = scmp.eq.s32.totalorder %s22, 3
    %p156 = por %p154, %p155
    %p157 = scmp.ne.s32.totalorder %s146, %s147
    %p158 = scmp.eq.s32.totalorder %s22, 0
    %p159 = por %p157, %p158
    %p160 = scmp.ne.s32.totalorder %s146, %s147
    %p161 = scmp.eq.s32.totalorder %s23, 3
    %p162 = por %p160, %p161
    %p164 = scmp.ne.s32.totalorder %s147, %s163
    %p165 = scmp.eq.s32.totalorder %s23, 0
    %p166 = por %p164, %p165
    %s167 = ssub.s32 %s25, %s32
    %p168 = scmp.eq.s32.totalorder %s167, 0
    %s170 = sadd.s32 %s169, 1
    %s171 = scalar_select %p168, %s169, %s170
    %p174 = pneg %p168
    %p175 = scmp.eq.s32.totalorder %s17, 3
    %p176 = por %p174, %p175
    %p177 = scmp.ne.s32.totalorder %s169, %s172
    %p178 = scmp.eq.s32.totalorder %s17, 0
    %p179 = por %p177, %p178
    %p180 = scmp.ne.s32.totalorder %s169, %s172
    %p181 = scmp.eq.s32.totalorder %s22, 3
    %p182 = por %p180, %p181
    %p183 = scmp.ne.s32.totalorder %s172, %s173
    %p184 = scmp.eq.s32.totalorder %s22, 0
    %p185 = por %p183, %p184
    %p186 = scmp.ne.s32.totalorder %s172, %s173
    %p187 = scmp.eq.s32.totalorder %s23, 3
    %p188 = por %p186, %p187
    %p190 = scmp.ne.s32.totalorder %s173, %s189
    %p191 = scmp.eq.s32.totalorder %s23, 0
    %p192 = por %p190, %p191
    %s193 = ssub.s32 %s25, %s32
    %p194 = scmp.eq.s32.totalorder %s193, 0
    %s196 = sadd.s32 %s195, 1
    %s197 = scalar_select %p194, %s195, %s196
    %p200 = pneg %p194
    %p201 = scmp.eq.s32.totalorder %s17, 3
    %p202 = por %p200, %p201
    %p203 = scmp.ne.s32.totalorder %s195, %s198
    %p204 = scmp.eq.s32.totalorder %s17, 0
    %p205 = por %p203, %p204
    %p206 = scmp.ne.s32.totalorder %s195, %s198
    %p207 = scmp.eq.s32.totalorder %s22, 3
    %p208 = por %p206, %p207
    %p209 = scmp.ne.s32.totalorder %s198, %s199
    %p210 = scmp.eq.s32.totalorder %s22, 0
    %p211 = por %p209, %p210
    %p212 = scmp.ne.s32.totalorder %s198, %s199
    %p213 = scmp.eq.s32.totalorder %s23, 3
    %p214 = por %p212, %p213
    %p216 = scmp.ne.s32.totalorder %s199, %s215
    %p217 = scmp.eq.s32.totalorder %s23, 0
    %p218 = por %p216, %p217
    %s219 = ssub.s32 %s25, %s32
    %p220 = scmp.eq.s32.totalorder %s219, 0
    %s222 = sadd.s32 %s221, 1
    %s223 = scalar_select %p220, %s221, %s222
    %p226 = pneg %p220
    %p227 = scmp.eq.s32.totalorder %s17, 3
    %p228 = por %p226, %p227
    %p229 = scmp.ne.s32.totalorder %s221, %s224
    %p230 = scmp.eq.s32.totalorder %s17, 0
    %p231 = por %p229, %p230
    %p232 = scmp.ne.s32.totalorder %s221, %s224
    %p233 = scmp.eq.s32.totalorder %s22, 3
    %p234 = por %p232, %p233
    %p235 = scmp.ne.s32.totalorder %s224, %s225
    %p236 = scmp.eq.s32.totalorder %s22, 0
    %p237 = por %p235, %p236
    %p238 = scmp.ne.s32.totalorder %s224, %s225
    %p239 = scmp.eq.s32.totalorder %s23, 3
    %p240 = por %p238, %p239
    %p242 = scmp.ne.s32.totalorder %s225, %s241
    %p243 = scmp.eq.s32.totalorder %s23, 0
    %p244 = por %p242, %p243
    %s245 = ssub.s32 %s25, %s32
    %p246 = scmp.eq.s32.totalorder %s245, 0
    %s248 = sadd.s32 %s247, 1
    %s249 = scalar_select %p246, %s247, %s248
    %p252 = pneg %p246
    %p253 = scmp.eq.s32.totalorder %s17, 3
    %p254 = por %p252, %p253
    %p255 = scmp.ne.s32.totalorder %s247, %s250
    %p256 = scmp.eq.s32.totalorder %s17, 0
    %p257 = por %p255, %p256
    %p258 = scmp.ne.s32.totalorder %s247, %s250
    %p259 = scmp.eq.s32.totalorder %s22, 3
    %p260 = por %p258, %p259
    %p261 = scmp.ne.s32.totalorder %s250, %s251
    %p262 = scmp.eq.s32.totalorder %s22, 0
    %p263 = por %p261, %p262
    %p264 = scmp.ne.s32.totalorder %s250, %s251
    %p265 = scmp.eq.s32.totalorder %s23, 3
    %p266 = por %p264, %p265
    %p268 = scmp.ne.s32.totalorder %s251, %s267
    %p269 = scmp.eq.s32.totalorder %s23, 0
    %p270 = por %p268, %p269
    %s272 = sadd.s32 %s271, 1
    %p275 = scmp.eq.s32.totalorder %s17, 3
    %p276 = scmp.ne.s32.totalorder %s271, %s273
    %p277 = scmp.eq.s32.totalorder %s17, 0
    %p278 = por %p276, %p277
    %p279 = scmp.ne.s32.totalorder %s271, %s273
    %p280 = scmp.eq.s32.totalorder %s22, 3
    %p281 = por %p279, %p280
    %p282 = scmp.ne.s32.totalorder %s273, %s274
    %p283 = scmp.eq.s32.totalorder %s22, 0
    %p284 = por %p282, %p283
    %p285 = scmp.ne.s32.totalorder %s273, %s274
    %p286 = scmp.eq.s32.totalorder %s23, 3
    %p287 = por %p285, %p286
    %p289 = scmp.ne.s32.totalorder %s274, %s288
    %p290 = scmp.eq.s32.totalorder %s23, 0
    %p291 = por %p289, %p290
    %s293 = sadd.s32 %s292, 1
    %p296 = scmp.eq.s32.totalorder %s17, 3
    %p297 = scmp.ne.s32.totalorder %s292, %s294
    %p298 = scmp.eq.s32.totalorder %s17, 0
    %p299 = por %p297, %p298
    %p300 = scmp.ne.s32.totalorder %s292, %s294
    %p301 = scmp.eq.s32.totalorder %s22, 3
    %p302 = por %p300, %p301
    %p303 = scmp.ne.s32.totalorder %s294, %s295
    %p304 = scmp.eq.s32.totalorder %s22, 0
    %p305 = por %p303, %p304
    %p306 = scmp.ne.s32.totalorder %s294, %s295
    %p307 = scmp.eq.s32.totalorder %s23, 3
    %p308 = por %p306, %p307
    %p310 = scmp.ne.s32.totalorder %s295, %s309
    %p311 = scmp.eq.s32.totalorder %s23, 0
    %p312 = por %p310, %p311
    %s313 = ssub.s32 %s24, %s36
    %p314 = scmp.eq.s32.totalorder %s313, 0
    %s316 = sadd.s32 %s315, 1
    %s317 = scalar_select %p314, %s315, %s316
    %p320 = pneg %p314
    %p321 = scmp.eq.s32.totalorder %s17, 3
    %p322 = por %p320, %p321
    %p323 = scmp.ne.s32.totalorder %s315, %s318
    %p324 = scmp.eq.s32.totalorder %s17, 0
    %p325 = por %p323, %p324
    %p326 = scmp.ne.s32.totalorder %s315, %s318
    %p327 = scmp.eq.s32.totalorder %s22, 3
    %p328 = por %p326, %p327
    %p329 = scmp.ne.s32.totalorder %s318, %s319
    %p330 = scmp.eq.s32.totalorder %s22, 0
    %p331 = por %p329, %p330
    %p332 = scmp.ne.s32.totalorder %s318, %s319
    %p333 = scmp.eq.s32.totalorder %s23, 3
    %p334 = por %p332, %p333
    %p336 = scmp.ne.s32.totalorder %s319, %s335
    %p337 = scmp.eq.s32.totalorder %s23, 0
    %p338 = por %p336, %p337
    %p339 = scmp.le.s32.totalorder 1, %s17
    %p340 = scmp.lt.s32.totalorder %s17, 5
    %p341 = pnand %p339, %p340
    %p342 = pneg %p341
    // Predicated region
    $region9: #{mamba_for_ner_forward.1} parent=5 // pred_check
      _
    $region10: #{mamba_for_ner_forward.1} parent=5 // pred_check_branch
      %344 = sbr.rel (%p341) target = $region12
    $region11: #{mamba_for_ner_forward.1} parent=5 // pred_region
      %s345 = ssub.s32 %s17, 1
      // Predicated region
      $region13: #{mamba_for_ner_forward.1} parent=11 // pred_check
        %p346 = pneg %p284
      $region14: #{mamba_for_ner_forward.1} parent=11 // pred_check_branch
        %348 = sbr.rel (%p346) target = $region16
      $region15: #{mamba_for_ner_forward.1} parent=11 // pred_region
        _
      $region16: #{mamba_for_ner_forward.1} parent=11 // pred_fallthru
        _
      // Predicated region
      $region17: #{mamba_for_ner_forward.1} parent=11 // pred_check
        %p349 = pneg %p305
      $region18: #{mamba_for_ner_forward.1} parent=11 // pred_check_branch
        %351 = sbr.rel (%p349) target = $region20
      $region19: #{mamba_for_ner_forward.1} parent=11 // pred_region
        _
      $region20: #{mamba_for_ner_forward.1} parent=11 // pred_fallthru
        _
    $region12: #{mamba_for_ner_forward.1} parent=5 // pred_fallthru
      _
    %p352 = scmp.lt.s32.totalorder %s17, 4
    // Predicated region
    $region21: #{mamba_for_ner_forward.1} parent=5 // pred_check
      %p353 = pneg %p352
    $region22: #{mamba_for_ner_forward.1} parent=5 // pred_check_branch
      %355 = sbr.rel (%p353) target = $region24
    $region23: #{mamba_for_ner_forward.1} parent=5 // pred_region
      // Predicated region
      $region25: #{mamba_for_ner_forward.1} parent=23 // pred_check
        %p356 = pneg %p49
      $region26: #{mamba_for_ner_forward.1} parent=23 // pred_check_branch
        %358 = sbr.rel (%p356) target = $region28
      $region27: #{mamba_for_ner_forward.1} parent=23 // pred_region
        %p359 = scmp.lt.s32.totalorder %s24, 1
        %s360 = scalar_select %p359, %s24, 1
        %s361 = smul.addr %s360, 2
        %s362 = smul.addr %s361, 8
        %s363 = scalar_lea.vmem %s0, %s362
      $region28: #{mamba_for_ner_forward.1} parent=23 // pred_fallthru
        _
      // Predicated region
      $region29: #{mamba_for_ner_forward.1} parent=23 // pred_check
        %p364 = pneg %p75
      $region30: #{mamba_for_ner_forward.1} parent=23 // pred_check_branch
        %366 = sbr.rel (%p364) target = $region32
      $region31: #{mamba_for_ner_forward.1} parent=23 // pred_region
        %p367 = scmp.lt.s32.totalorder %s25, 1
        %s368 = scalar_select %p367, %s25, 1
        %s369 = scalar_lea.vmem %s1, %s368
      $region32: #{mamba_for_ner_forward.1} parent=23 // pred_fallthru
        _
      // Predicated region
      $region33: #{mamba_for_ner_forward.1} parent=23 // pred_check
        %p370 = pneg %p101
      $region34: #{mamba_for_ner_forward.1} parent=23 // pred_check_branch
        %372 = sbr.rel (%p370) target = $region36
      $region35: #{mamba_for_ner_forward.1} parent=23 // pred_region
        %p373 = scmp.lt.s32.totalorder %s25, 1
        %s374 = scalar_select %p373, %s25, 1
        %s375 = smul.addr %s374, 4
        %s376 = smul.addr %s375, 4
        %s377 = scalar_lea.vmem %s2, %s376
      $region36: #{mamba_for_ner_forward.1} parent=23 // pred_fallthru
        _
      // Predicated region
      $region37: #{mamba_for_ner_forward.1} parent=23 // pred_check
        %p378 = pneg %p127
      $region38: #{mamba_for_ner_forward.1} parent=23 // pred_check_branch
        %380 = sbr.rel (%p378) target = $region40
      $region39: #{mamba_for_ner_forward.1} parent=23 // pred_region
        %p381 = scmp.lt.s32.totalorder %s25, 1
        %s382 = scalar_select %p381, %s25, 1
        %s383 = smul.addr %s382, 4
        %s384 = scalar_lea.vmem %s3, %s383
      $region40: #{mamba_for_ner_forward.1} parent=23 // pred_fallthru
        _
      // Predicated region
      $region41: #{mamba_for_ner_forward.1} parent=23 // pred_check
        %p385 = pneg %p153
      $region42: #{mamba_for_ner_forward.1} parent=23 // pred_check_branch
        %387 = sbr.rel (%p385) target = $region44
      $region43: #{mamba_for_ner_forward.1} parent=23 // pred_region
        %p388 = scmp.lt.s32.totalorder %s25, 1
        %s389 = scalar_select %p388, %s25, 1
        %s390 = smul.addr %s389, 4
        %s391 = scalar_lea.vmem %s4, %s390
      $region44: #{mamba_for_ner_forward.1} parent=23 // pred_fallthru
        _
      // Predicated region
      $region45: #{mamba_for_ner_forward.1} parent=23 // pred_check
        %p392 = pneg %p179
      $region46: #{mamba_for_ner_forward.1} parent=23 // pred_check_branch
        %394 = sbr.rel (%p392) target = $region48
      $region47: #{mamba_for_ner_forward.1} parent=23 // pred_region
        %p395 = scmp.lt.s32.totalorder %s25, 1
        %s396 = scalar_select %p395, %s25, 1
        %s397 = smul.addr %s396, 16
        %s398 = smul.addr %s397, 4
        %s399 = scalar_lea.vmem %s5, %s398
      $region48: #{mamba_for_ner_forward.1} parent=23 // pred_fallthru
        _
      // Predicated region
      $region49: #{mamba_for_ner_forward.1} parent=23 // pred_check
        %p400 = pneg %p205
      $region50: #{mamba_for_ner_forward.1} parent=23 // pred_check_branch
        %402 = sbr.rel (%p400) target = $region52
      $region51: #{mamba_for_ner_forward.1} parent=23 // pred_region
        %p403 = scmp.lt.s32.totalorder %s25, 1
        %s404 = scalar_select %p403, %s25, 1
        %s405 = smul.addr %s404, 16
        %s406 = smul.addr %s405, 4
        %s407 = scalar_lea.vmem %s6, %s406
      $region52: #{mamba_for_ner_forward.1} parent=23 // pred_fallthru
        _
      // Predicated region
      $region53: #{mamba_for_ner_forward.1} parent=23 // pred_check
        %p408 = pneg %p231
      $region54: #{mamba_for_ner_forward.1} parent=23 // pred_check_branch
        %410 = sbr.rel (%p408) target = $region56
      $region55: #{mamba_for_ner_forward.1} parent=23 // pred_region
        %p411 = scmp.lt.s32.totalorder %s25, 1
        %s412 = scalar_select %p411, %s25, 1
        %s413 = smul.addr %s412, 2
        %s414 = smul.addr %s413, 8
        %s415 = scalar_lea.vmem %s7, %s414
      $region56: #{mamba_for_ner_forward.1} parent=23 // pred_fallthru
        _
      // Predicated region
      $region57: #{mamba_for_ner_forward.1} parent=23 // pred_check
        %p416 = pneg %p257
      $region58: #{mamba_for_ner_forward.1} parent=23 // pred_check_branch
        %418 = sbr.rel (%p416) target = $region60
      $region59: #{mamba_for_ner_forward.1} parent=23 // pred_region
        %p419 = scmp.lt.s32.totalorder %s25, 1
        %s420 = scalar_select %p419, %s25, 1
        %s421 = smul.addr %s420, 8
        %s422 = smul.addr %s421, 4
        %s423 = scalar_lea.vmem %s8, %s422
      $region60: #{mamba_for_ner_forward.1} parent=23 // pred_fallthru
        _
    $region24: #{mamba_for_ner_forward.1} parent=5 // pred_fallthru
      _
    %p424 = scmp.le.s32.totalorder 1, %s17
    %p425 = scmp.lt.s32.totalorder %s17, 5
    %p426 = pnand %p424, %p425
    %p427 = pneg %p426
    // Predicated region
    $region61: #{mamba_for_ner_forward.1} parent=5 // pred_check
      _
    $region62: #{mamba_for_ner_forward.1} parent=5 // pred_check_branch
      %429 = sbr.rel (%p426) target = $region64
    $region63: #{mamba_for_ner_forward.1} parent=5 // pred_region
      %s430 = ssub.s32 %s17, 1
      %p431 = scmp.lt.s32.totalorder %s26, 1
      %s432 = scalar_select %p431, %s26, 1
      %s433 = smul.addr %s432, 2
      %s434 = smul.addr %s433, 8
      %s435 = scalar_lea.vmem %s0, %s434
      %p436 = pneg %p55
      %p437 = pneg %p52
      %p438 = scmp.lt.s32.totalorder %s27, 1
      %s439 = scalar_select %p438, %s27, 1
      %s440 = scalar_lea.vmem %s1, %s439
      %p441 = pneg %p81
      %p442 = pneg %p78
      %p443 = scmp.lt.s32.totalorder %s27, 1
      %s444 = scalar_select %p443, %s27, 1
      %s445 = smul.addr %s444, 4
      %s446 = smul.addr %s445, 4
      %s447 = scalar_lea.vmem %s2, %s446
      %p448 = pneg %p107
      %p449 = pneg %p104
      %p450 = scmp.lt.s32.totalorder %s27, 1
      %s451 = scalar_select %p450, %s27, 1
      %s452 = smul.addr %s451, 4
      %s453 = scalar_lea.vmem %s3, %s452
      %p454 = pneg %p133
      %p455 = pneg %p130
      %p456 = scmp.lt.s32.totalorder %s27, 1
      %s457 = scalar_select %p456, %s27, 1
      %s458 = smul.addr %s457, 4
      %s459 = scalar_lea.vmem %s4, %s458
      %p460 = pneg %p159
      %p461 = pneg %p156
      %p462 = scmp.lt.s32.totalorder %s27, 1
      %s463 = scalar_select %p462, %s27, 1
      %s464 = smul.addr %s463, 16
      %s465 = smul.addr %s464, 4
      %s466 = scalar_lea.vmem %s5, %s465
      %p467 = pneg %p185
      %p468 = pneg %p182
      %p469 = scmp.lt.s32.totalorder %s27, 1
      %s470 = scalar_select %p469, %s27, 1
      %s471 = smul.addr %s470, 16
      %s472 = smul.addr %s471, 4
      %s473 = scalar_lea.vmem %s6, %s472
      %p474 = pneg %p211
      %p475 = pneg %p208
      %p476 = scmp.lt.s32.totalorder %s27, 1
      %s477 = scalar_select %p476, %s27, 1
      %s478 = smul.addr %s477, 2
      %s479 = smul.addr %s478, 8
      %s480 = scalar_lea.vmem %s7, %s479
      %p481 = pneg %p237
      %p482 = pneg %p234
      %p483 = scmp.lt.s32.totalorder %s27, 1
      %s484 = scalar_select %p483, %s27, 1
      %s485 = smul.addr %s484, 8
      %s486 = smul.addr %s485, 4
      %s487 = scalar_lea.vmem %s8, %s486
      %p488 = pneg %p263
      %p489 = pneg %p260
      %p490 = pneg %p284
      %p491 = pneg %p281
      %p492 = pneg %p305
      %p493 = pneg %p302
      %p494 = pneg %p331
      %p495 = pneg %p328
      %p496 = scmp.lt.s32.totalorder %s26, 1
      %s497 = scalar_select %p496, %s26, 1
      %s498 = smul.addr %s497, 2
      %s499 = smul.addr %s498, 8
      %s500 = scalar_lea.vmem %s11, %s499
      %p501 = scmp.lt.s32.totalorder %s26, 1
      %s502 = scalar_select %p501, %s26, 1
      %s503 = smul.addr %s502, 2
      %s504 = smul.addr %s503, 8
      %s505 = scalar_lea.vmem %s0, %s504
      %p506 = scmp.lt.s32.totalorder %s27, 1
      %s507 = scalar_select %p506, %s27, 1
      %s508 = scalar_lea.vmem %s1, %s507
      %p509 = scmp.lt.s32.totalorder %s27, 1
      %s510 = scalar_select %p509, %s27, 1
      %s511 = smul.addr %s510, 4
      %s512 = smul.addr %s511, 4
      %s513 = scalar_lea.vmem %s2, %s512
      %p514 = scmp.lt.s32.totalorder %s27, 1
      %s515 = scalar_select %p514, %s27, 1
      %s516 = smul.addr %s515, 4
      %s517 = scalar_lea.vmem %s3, %s516
      %p518 = scmp.lt.s32.totalorder %s27, 1
      %s519 = scalar_select %p518, %s27, 1
      %s520 = smul.addr %s519, 4
      %s521 = scalar_lea.vmem %s4, %s520
      %p522 = scmp.lt.s32.totalorder %s27, 1
      %s523 = scalar_select %p522, %s27, 1
      %s524 = smul.addr %s523, 16
      %s525 = smul.addr %s524, 4
      %s526 = scalar_lea.vmem %s5, %s525
      %p527 = scmp.lt.s32.totalorder %s27, 1
      %s528 = scalar_select %p527, %s27, 1
      %s529 = smul.addr %s528, 16
      %s530 = smul.addr %s529, 4
      %s531 = scalar_lea.vmem %s6, %s530
      %p532 = scmp.lt.s32.totalorder %s27, 1
      %s533 = scalar_select %p532, %s27, 1
      %s534 = smul.addr %s533, 2
      %s535 = smul.addr %s534, 8
      %s536 = scalar_lea.vmem %s7, %s535
      %p537 = scmp.lt.s32.totalorder %s27, 1
      %s538 = scalar_select %p537, %s27, 1
      %s539 = smul.addr %s538, 8
      %s540 = smul.addr %s539, 4
      %s541 = scalar_lea.vmem %s8, %s540
      %p542 = scmp.lt.s32.totalorder %s26, 1
      %s543 = scalar_select %p542, %s26, 1
      %s544 = smul.addr %s543, 2
      %s545 = smul.addr %s544, 8
      %s546 = scalar_lea.vmem %s11, %s545
      %p548 = scmp.eq.s32.totalorder %s27, 0
      // Predicated region
      $region65: #{mamba_for_ner_forward.1} parent=63 // pred_check
        %p549 = pneg %p548
      $region66: #{mamba_for_ner_forward.1} parent=63 // pred_check_branch
        %551 = sbr.rel (%p549) target = $region68
      $region67: #{mamba_for_ner_forward.1} parent=63 // pred_region
        %v552 = vld [vmem:[%s505] sm:$0xff]
        %v553 = vld [vmem:[%s505 + $0x8] sm:$0xff]
        %vm554 = vcmask 261120
        %555 = vst.msk [vmem:[#allocation2] sm:$0xff] %vm554, %v552
        %556 = vst.msk [vmem:[#allocation2 + $0x8] sm:$0xff] %vm554, %v553
        %557 = vst.msk [vmem:[#allocation3] sm:$0xff] %vm554, 0.0
        %558 = vst.msk [vmem:[#allocation3 + $0x8] sm:$0xff] %vm554, 0.0
      $region68: #{mamba_for_ner_forward.1} parent=63 // pred_fallthru
        _
      %v559 = vld [vmem:[#allocation2] sm:$0xff]
      %v560 = vld [vmem:[#allocation2 + $0x8] sm:$0xff]
      %v561 = vld [vmem:[#allocation3] sm:$0xff]
      %v562 = vld [vmem:[#allocation3 + $0x8] sm:$0xff]
      %v563 = vadd.f32 %v559, %v561
      %v564 = vadd.f32 %v560, %v562
      %vm565 = vcmask 261120
      %566 = vst.msk [vmem:[#allocation3] sm:$0xff] %vm565, %v563
      %567 = vst.msk [vmem:[#allocation3 + $0x8] sm:$0xff] %vm565, %v564
      %v568 = vmul.f32 %v563, %v563
      %v569 = vmul.f32 %v564, %v564
      %v570 = vsel %vm565, %v568, 0.0
      %571 = vadd.xlane.f32.xlu0 %v570
      %v572 = vpop.xlane.xlu0 %571
      %v573 = vsel %vm565, %v569, 0.0
      %574 = vadd.xlane.f32.xlu0 %v573
      %v575 = vpop.xlane.xlu0 %574
      %v576 = vrcp.pop 32.0
      %v577 = vmul.f32 %v572, %v576
      %v578 = vmul.f32 %v575, %v576
      %v579 = vadd.f32 %v577, 1e-05
      %v580 = vadd.f32 %v578, 1e-05
      %v581 = vrsqrt.pop %v579
      %v582 = vrsqrt.pop %v580
      %v583 = vmul.f32 %v563, %v581
      %v584 = vmul.f32 %v564, %v582
      %v585 = vld [vmem:[%s508] sm:$0x1]
      %v587 = vlaneseq
      %v588 = vshrl.u32 %v587, 7
      %v589 = vsub.s32 0, %v588
      %v590 = vrot.slane %v585, %v589
      %v592 = vmul.f32 %v583, %v590
      %v593 = vmul.f32 %v584, %v590
      %v594 = vpack.c.bf16 %v593, %v592
      %v595 = vld [vmem:[%s513] sm:$0xf]
      %v596 = vld [vmem:[%s513 + $0x4] sm:$0xf]
      %v597 = vld [vmem:[%s513 + $0x8] sm:$0xf]
      %v598 = vld [vmem:[%s513 + $0xc] sm:$0xf]
      %v603 = vunpack.c.l.b16 %v595
      %v604 = vunpack.c.l.b16 %v596
      %v605 = vunpack.c.l.b16 %v597
      %v606 = vunpack.c.l.b16 %v598
      %v607 = vpack.c.b16 %v604, %v603
      %v608 = vpack.c.b16 %v606, %v605
      %v612 = vsel %vm565, %v594, 0
      %614 = vmatprep.subr.bf16.mxu0 0
      %615 = vmatpush1.bf16.msra.mxu0 0
      %616 = vmatprep.subr.bf16.mxu0 0
      %617 = vmatpush1.bf16.msra.mxu0 0
      %618 = vmatprep.subr.bf16.mxu0 0
      %619 = vmatpush1.bf16.msra.mxu0 0
      %620 = vmatprep.subr.bf16.mxu0 0
      %621 = vmatpush1.bf16.msra.mxu0 0
      %622 = vmatprep.subr.bf16.mxu0 0
      %623 = vmatpush1.bf16.msra.mxu0 0
      %624 = vmatprep.subr.bf16.mxu0 0
      %625 = vmatpush1.bf16.msra.mxu0 0
      %626 = vmatprep.subr.bf16.mxu0 0
      %627 = vmatpush1.bf16.msra.mxu0 %v608
      %628 = vmatprep.subr.bf16.mxu0 0
      %629 = vmatpush1.bf16.msra.mxu0 %v607
      %630 = vmatprep.subr.bf16.mxu0 0
      %631 = vmatpush2.bf16.msra.mxu0 0
      %632 = vmatprep.subr.bf16.mxu0 0
      %633 = vmatpush2.bf16.msra.mxu0 0
      %634 = vmatprep.subr.bf16.mxu0 0
      %635 = vmatpush2.bf16.msra.mxu0 0
      %636 = vmatprep.subr.bf16.mxu0 0
      %637 = vmatpush2.bf16.msra.mxu0 0
      %638 = vmatprep.subr.bf16.mxu0 0
      %639 = vmatpush2.bf16.msra.mxu0 0
      %640 = vmatprep.subr.bf16.mxu0 0
      %641 = vmatpush2.bf16.msra.mxu0 0
      %642 = vmatprep.subr.bf16.mxu0 0
      %643 = vmatpush2.bf16.msra.mxu0 0
      %644 = vmatprep.subr.bf16.mxu0 0
      %645 = vmatpush2.bf16.msra.mxu0 0
      %646 = vmatprep.mubr.bf16.mxu0 0
      %647 = vmatmul.mubr.bf16.gmra.mxu0 %v612
      %v648 = vpop.f32.mrf.mxu0
      %v649 = vadd.f32 0.0, %v648
      %v650 = vpop.f32.mrf.mxu0
      %v651 = vpop.f32.mrf.mxu0
      %v652 = vadd.f32 0.0, %v651
      %v653 = vpop.f32.mrf.mxu0
      %654 = vdwg.mxu0
      %v655 = vlaneseq
      %v656 = vshrl.u32 %v655, 7
      %v657 = vadd.s32 %v656, 8
      %v658 = vld [vmem:[%s521] sm:$0x1]
      %v659 = vld [vmem:[%s517 + $0x3] sm:$0x1]
      %v660 = vlaneseq
      %v661 = vshrl.u32 %v660, 7
      %v662 = vsub.s32 0, %v661
      %v663 = vrot.slane %v659, %v662
      %v664 = vmul.f32 %v649, %v663
      %v665 = vmul.f32 %v652, %v663
      %v666 = vlaneseq
      %v667 = vshrl.u32 %v666, 7
      %v668 = vsub.s32 0, %v667
      %v669 = vrot.slane %v658, %v668
      %v670 = vadd.f32 %v669, %v664
      %v671 = vadd.f32 %v669, %v665
      %v672 = vrot.slane %v649, 7
      %v673 = vrot.slane %v652, 7
      %vm674 = vcmp.lt.s32.totalorder %v656, 1
      %v675 = vsel %vm674, %v672, %v673
      %v676 = vsel %vm674, %v673, %v672
      %vm677 = vcmp.ge.s32.totalorder %v656, 1
      %vm678 = vcmp.ge.s32.totalorder %v657, 1
      %v679 = vsel %vm677, 1, 0
      %v680 = vsel %vm678, 1, 0
      %vm681 = vcmp.eq.s32.totalorder %v679, 1
      %vm682 = vcmp.eq.s32.totalorder %v680, 1
      %v683 = vsel %vm681, %v676, 0.0
      %v684 = vsel %vm682, %v675, 0.0
      %v685 = vld [vmem:[%s517 + $0x2] sm:$0x1]
      %v686 = vlaneseq
      %v687 = vshrl.u32 %v686, 7
      %v688 = vsub.s32 0, %v687
      %v689 = vrot.slane %v685, %v688
      %v690 = vmul.f32 %v683, %v689
      %v691 = vmul.f32 %v684, %v689
      %v692 = vadd.f32 %v670, %v690
      %v693 = vadd.f32 %v671, %v691
      %v694 = vrot.slane %v649, 6
      %v695 = vrot.slane %v652, 6
      %vm696 = vcmp.lt.s32.totalorder %v656, 2
      %v697 = vsel %vm696, %v694, %v695
      %v698 = vsel %vm696, %v695, %v694
      %vm699 = vcmp.ge.s32.totalorder %v656, 2
      %vm700 = vcmp.ge.s32.totalorder %v657, 2
      %v701 = vsel %vm699, 1, 0
      %v702 = vsel %vm700, 1, 0
      %vm703 = vcmp.eq.s32.totalorder %v701, 1
      %vm704 = vcmp.eq.s32.totalorder %v702, 1
      %v705 = vsel %vm703, %v698, 0.0
      %v706 = vsel %vm704, %v697, 0.0
      %v707 = vld [vmem:[%s517 + $0x1] sm:$0x1]
      %v708 = vlaneseq
      %v709 = vshrl.u32 %v708, 7
      %v710 = vsub.s32 0, %v709
      %v711 = vrot.slane %v707, %v710
      %v712 = vmul.f32 %v705, %v711
      %v713 = vmul.f32 %v706, %v711
      %v714 = vadd.f32 %v692, %v712
      %v715 = vadd.f32 %v693, %v713
      %v716 = vrot.slane %v649, 5
      %v717 = vrot.slane %v652, 5
      %vm718 = vcmp.lt.s32.totalorder %v656, 3
      %v719 = vsel %vm718, %v716, %v717
      %v720 = vsel %vm718, %v717, %v716
      %vm721 = vcmp.ge.s32.totalorder %v656, 3
      %vm722 = vcmp.ge.s32.totalorder %v657, 3
      %v723 = vsel %vm721, 1, 0
      %v724 = vsel %vm722, 1, 0
      %vm725 = vcmp.eq.s32.totalorder %v723, 1
      %vm726 = vcmp.eq.s32.totalorder %v724, 1
      %v727 = vsel %vm725, %v720, 0.0
      %v728 = vsel %vm726, %v719, 0.0
      %v729 = vld [vmem:[%s517] sm:$0x1]
      %v730 = vlaneseq
      %v731 = vshrl.u32 %v730, 7
      %v732 = vsub.s32 0, %v731
      %v733 = vrot.slane %v729, %v732
      %v734 = vmul.f32 %v727, %v733
      %v735 = vmul.f32 %v728, %v733
      %v736 = vadd.f32 %v714, %v734
      %v737 = vadd.f32 %v715, %v735
      %v738 = vxor.u32 %v736, 2147483648
      %v739 = vxor.u32 %v737, 2147483648
      %v740 = vmul.f32 %v738, 1.442695
      %v741 = vpow.pop %v740
      %v742 = vmul.f32 %v739, 1.442695
      %v743 = vpow.pop %v742
      %v744 = vadd.f32 %v741, 1.0
      %v745 = vadd.f32 %v743, 1.0
      %v746 = vrcp.pop %v744
      %v747 = vmul.f32 1.0, %v746
      %v748 = vrcp.pop %v745
      %v749 = vmul.f32 1.0, %v748
      %v750 = vmul.f32 %v736, %v747
      %v751 = vmul.f32 %v737, %v749
      %vm752 = vcmask 523264
      %753 = vst.msk [vmem:[#allocation4] sm:$0xff] %vm752, %v750
      %754 = vst.msk [vmem:[#allocation4 + $0x8] sm:$0xff] %vm752, %v751
      %v755 = vpack.c.bf16 %v751, %v750
      %v756 = vld [vmem:[%s526] sm:$0xff]
      %v757 = vld [vmem:[%s526 + $0x8] sm:$0xff]
      %v758 = vld [vmem:[%s526 + $0x10] sm:$0xff]
      %v759 = vld [vmem:[%s526 + $0x18] sm:$0xff]
      %v760 = vld [vmem:[%s526 + $0x20] sm:$0xff]
      %v761 = vld [vmem:[%s526 + $0x28] sm:$0xff]
      %v762 = vld [vmem:[%s526 + $0x30] sm:$0xff]
      %v763 = vld [vmem:[%s526 + $0x38] sm:$0xff]
      %v772 = vunpack.c.l.b16 %v756
      %v773 = vunpack.c.h.b16 %v756
      %v774 = vunpack.c.l.b16 %v757
      %v775 = vunpack.c.h.b16 %v757
      %v776 = vunpack.c.l.b16 %v758
      %v777 = vunpack.c.h.b16 %v758
      %v778 = vunpack.c.l.b16 %v759
      %v779 = vunpack.c.h.b16 %v759
      %v780 = vunpack.c.l.b16 %v760
      %v781 = vunpack.c.h.b16 %v760
      %v782 = vunpack.c.l.b16 %v761
      %v783 = vunpack.c.h.b16 %v761
      %v784 = vunpack.c.l.b16 %v762
      %v785 = vunpack.c.h.b16 %v762
      %v786 = vunpack.c.l.b16 %v763
      %v787 = vunpack.c.h.b16 %v763
      %v788 = vpack.c.b16 %v774, %v772
      %v789 = vpack.c.b16 %v775, %v773
      %v790 = vpack.c.b16 %v778, %v776
      %v791 = vpack.c.b16 %v779, %v777
      %v792 = vpack.c.b16 %v782, %v780
      %v793 = vpack.c.b16 %v783, %v781
      %v794 = vpack.c.b16 %v786, %v784
      %v795 = vpack.c.b16 %v787, %v785
      %v805 = vsel %vm752, %v755, 0
      %807 = vmatprep.subr.bf16.mxu0 0
      %808 = vmatpush1.bf16.msra.mxu0 0
      %809 = vmatprep.subr.bf16.mxu0 0
      %810 = vmatpush1.bf16.msra.mxu0 0
      %811 = vmatprep.subr.bf16.mxu0 0
      %812 = vmatpush1.bf16.msra.mxu0 0
      %813 = vmatprep.subr.bf16.mxu0 0
      %814 = vmatpush1.bf16.msra.mxu0 0
      %815 = vmatprep.subr.bf16.mxu0 %v795
      %816 = vmatpush1.bf16.msra.mxu0 %v794
      %817 = vmatprep.subr.bf16.mxu0 %v793
      %818 = vmatpush1.bf16.msra.mxu0 %v792
      %819 = vmatprep.subr.bf16.mxu0 %v791
      %820 = vmatpush1.bf16.msra.mxu0 %v790
      %821 = vmatprep.subr.bf16.mxu0 %v789
      %822 = vmatpush1.bf16.msra.mxu0 %v788
      %823 = vmatprep.subr.bf16.mxu0 0
      %824 = vmatpush2.bf16.msra.mxu0 0
      %825 = vmatprep.subr.bf16.mxu0 0
      %826 = vmatpush2.bf16.msra.mxu0 0
      %827 = vmatprep.subr.bf16.mxu0 0
      %828 = vmatpush2.bf16.msra.mxu0 0
      %829 = vmatprep.subr.bf16.mxu0 0
      %830 = vmatpush2.bf16.msra.mxu0 0
      %831 = vmatprep.subr.bf16.mxu0 0
      %832 = vmatpush2.bf16.msra.mxu0 0
      %833 = vmatprep.subr.bf16.mxu0 0
      %834 = vmatpush2.bf16.msra.mxu0 0
      %835 = vmatprep.subr.bf16.mxu0 0
      %836 = vmatpush2.bf16.msra.mxu0 0
      %837 = vmatprep.subr.bf16.mxu0 0
      %838 = vmatpush2.bf16.msra.mxu0 0
      %839 = vmatprep.mubr.bf16.mxu0 0
      %840 = vmatmul.mubr.bf16.gmra.mxu0 %v805
      %v841 = vpop.f32.mrf.mxu0
      %v842 = vadd.f32 0.0, %v841
      %v843 = vpop.f32.mrf.mxu0
      %v844 = vadd.f32 0.0, %v843
      %v845 = vpop.f32.mrf.mxu0
      %v846 = vadd.f32 0.0, %v845
      %v847 = vpop.f32.mrf.mxu0
      %v848 = vadd.f32 0.0, %v847
      %849 = vdwg.mxu0
      %v850 = vpack.c.bf16 %v846, %v842
      %v851 = vld [vmem:[%s531] sm:$0xf]
      %v852 = vld [vmem:[%s531 + $0x4] sm:$0xf]
      %v853 = vld [vmem:[%s531 + $0x8] sm:$0xf]
      %v854 = vld [vmem:[%s531 + $0xc] sm:$0xf]
      %v855 = vld [vmem:[%s531 + $0x10] sm:$0xf]
      %v856 = vld [vmem:[%s531 + $0x14] sm:$0xf]
      %v857 = vld [vmem:[%s531 + $0x18] sm:$0xf]
      %v858 = vld [vmem:[%s531 + $0x1c] sm:$0xf]
      %v859 = vld [vmem:[%s531 + $0x20] sm:$0xf]
      %v860 = vld [vmem:[%s531 + $0x24] sm:$0xf]
      %v861 = vld [vmem:[%s531 + $0x28] sm:$0xf]
      %v862 = vld [vmem:[%s531 + $0x2c] sm:$0xf]
      %v863 = vld [vmem:[%s531 + $0x30] sm:$0xf]
      %v864 = vld [vmem:[%s531 + $0x34] sm:$0xf]
      %v865 = vld [vmem:[%s531 + $0x38] sm:$0xf]
      %v866 = vld [vmem:[%s531 + $0x3c] sm:$0xf]
      %v867 = vld [vmem:[%s521 + $0x1] sm:$0x1]
      %v868 = vlaneseq
      %v869 = vshrl.u32 %v868, 7
      %v870 = vsub.s32 0, %v869
      %v871 = vrot.slane %v867, %v870
      %v888 = vunpack.c.l.b16 %v851
      %v889 = vunpack.c.l.b16 %v852
      %v890 = vunpack.c.l.b16 %v853
      %v891 = vunpack.c.l.b16 %v854
      %v892 = vunpack.c.l.b16 %v855
      %v893 = vunpack.c.l.b16 %v856
      %v894 = vunpack.c.l.b16 %v857
      %v895 = vunpack.c.l.b16 %v858
      %v896 = vunpack.c.l.b16 %v859
      %v897 = vunpack.c.l.b16 %v860
      %v898 = vunpack.c.l.b16 %v861
      %v899 = vunpack.c.l.b16 %v862
      %v900 = vunpack.c.l.b16 %v863
      %v901 = vunpack.c.l.b16 %v864
      %v902 = vunpack.c.l.b16 %v865
      %v903 = vunpack.c.l.b16 %v866
      %v904 = vpack.c.b16 %v889, %v888
      %v905 = vpack.c.b16 %v891, %v890
      %v906 = vpack.c.b16 %v893, %v892
      %v907 = vpack.c.b16 %v895, %v894
      %v908 = vpack.c.b16 %v897, %v896
      %v909 = vpack.c.b16 %v899, %v898
      %v910 = vpack.c.b16 %v901, %v900
      %v911 = vpack.c.b16 %v903, %v902
      %920 = vmatprep.subr.bf16.mxu0 0
      %921 = vmatpush1.bf16.msra.mxu0 %v911
      %922 = vmatprep.subr.bf16.mxu0 0
      %923 = vmatpush1.bf16.msra.mxu0 %v910
      %924 = vmatprep.subr.bf16.mxu0 0
      %925 = vmatpush1.bf16.msra.mxu0 %v909
      %926 = vmatprep.subr.bf16.mxu0 0
      %927 = vmatpush1.bf16.msra.mxu0 %v908
      %928 = vmatprep.subr.bf16.mxu0 0
      %929 = vmatpush1.bf16.msra.mxu0 %v907
      %930 = vmatprep.subr.bf16.mxu0 0
      %931 = vmatpush1.bf16.msra.mxu0 %v906
      %932 = vmatprep.subr.bf16.mxu0 0
      %933 = vmatpush1.bf16.msra.mxu0 %v905
      %934 = vmatprep.subr.bf16.mxu0 0
      %935 = vmatpush1.bf16.msra.mxu0 %v904
      %936 = vmatprep.subr.bf16.mxu0 0
      %937 = vmatpush2.bf16.msra.mxu0 0
      %938 = vmatprep.subr.bf16.mxu0 0
      %939 = vmatpush2.bf16.msra.mxu0 0
      %940 = vmatprep.subr.bf16.mxu0 0
      %941 = vmatpush2.bf16.msra.mxu0 0
      %942 = vmatprep.subr.bf16.mxu0 0
      %943 = vmatpush2.bf16.msra.mxu0 0
      %944 = vmatprep.subr.bf16.mxu0 0
      %945 = vmatpush2.bf16.msra.mxu0 0
      %946 = vmatprep.subr.bf16.mxu0 0
      %947 = vmatpush2.bf16.msra.mxu0 0
      %948 = vmatprep.subr.bf16.mxu0 0
      %949 = vmatpush2.bf16.msra.mxu0 0
      %950 = vmatprep.subr.bf16.mxu0 0
      %951 = vmatpush2.bf16.msra.mxu0 0
      %952 = vmatprep.mubr.bf16.mxu0 0
      %953 = vmatmul.mubr.bf16.gmra.mxu0 %v850
      %v954 = vpop.f32.mrf.mxu0
      %v955 = vadd.f32 %v871, %v954
      %v956 = vpop.f32.mrf.mxu0
      %v957 = vpop.f32.mrf.mxu0
      %v958 = vadd.f32 %v871, %v957
      %v959 = vpop.f32.mrf.mxu0
      %960 = vdwg.mxu0
      %v961 = vmax.f32 %v955, 0.0
      %v962 = vmax.f32 %v958, 0.0
      %vm963 = vcmp.ne.f32.partialorder %v955, %v955
      %vm964 = vcmp.ne.f32.partialorder %v958, %v958
      %v965 = vadd.f32 %v955, 0.0
      %v966 = vadd.f32 %v958, 0.0
      %v967 = vand.u32 2147483647, %v955
      %v968 = vand.u32 2147483647, %v958
      %v969 = vsub.f32 0.0, %v967
      %v970 = vsub.f32 0.0, %v968
      %v971 = vmul.f32 %v969, 1.442695
      %v972 = vpow.pop %v971
      %v973 = vmul.f32 %v970, 1.442695
      %v974 = vpow.pop %v973
      %v975 = vadd.f32 %v972, 1.0
      %v976 = vlog2.pop %v975
      %v977 = vmul.f32 %v976, 0.6931472
      %v978 = vmul.f32 -0.5, %v972
      %v979 = vadd.f32 %v978, 1.0
      %v980 = vmul.f32 %v979, %v972
      %v981 = vand.u32 2147483647, %v972
      %vm982 = vcmp.lt.f32.partialorder %v981, 0.0004427343
      %v983 = vsel %vm982, %v980, %v977
      %v984 = vadd.f32 %v974, 1.0
      %v985 = vlog2.pop %v984
      %v986 = vmul.f32 %v985, 0.6931472
      %v987 = vmul.f32 -0.5, %v974
      %v988 = vadd.f32 %v987, 1.0
      %v989 = vmul.f32 %v988, %v974
      %v990 = vand.u32 2147483647, %v974
      %vm991 = vcmp.lt.f32.partialorder %v990, 0.0004427343
      %v992 = vsel %vm991, %v989, %v986
      %v993 = vadd.f32 %v961, %v983
      %v994 = vadd.f32 %v962, %v992
      %v995 = vsel %vm963, %v965, %v993
      %v996 = vsel %vm964, %v966, %v994
      %997 = vst.msk [vmem:[#allocation5] sm:$0xff] %vm752, %v995
      %998 = vst.msk [vmem:[#allocation5 + $0x8] sm:$0xff] %vm752, %v996
      %999 = vst [vmem:[#allocation6] sm:$0xff] %v844
      %1000 = vst [vmem:[#allocation6 + $0x8] sm:$0xff] %v848
      %v1001 = vld [vmem:[%s536] sm:$0xff]
      %v1002 = vld [vmem:[%s536 + $0x8] sm:$0xff]
      %v1003 = vmul.f32 %v1001, 1.442695
      %v1004 = vpow.pop %v1003
      %v1005 = vmul.f32 %v1002, 1.442695
      %v1006 = vpow.pop %v1005
      %v1007 = vsub.f32 0.0, %v1004
      %v1008 = vsub.f32 0.0, %v1006
      %1009 = vst.msk [vmem:[#allocation8] sm:$0xff] %vm752, 0.0
      %1010 = vst.msk [vmem:[#allocation8 + $0x8] sm:$0xff] %vm752, 0.0
      loop: start=0, step=1, limit=2
      $region69: #{mamba_for_ner_forward.1} parent=63 // loop_pre_header
        _
      $region70: #{mamba_for_ner_forward.1} parent=63 // loop_header
        %s1012 = sphi 0, %s1016
        %p1013 = scmp.ge.s32.totalorder %s1012, 2
      $region71: #{mamba_for_ner_forward.1} parent=63 // loop_header_branch
        %1015 = sbr.rel (%p1013) target = $region75
      $region72: #{mamba_for_ner_forward.1} parent=63 // loop_body
        %s1017 = smul.u32 %s1012, 8
        %s1018 = scalar_lea.vmem [#allocation5], %s1017
        %v1019 = vld [vmem:[%s1018] sm:$0xff]
        %s1020 = scalar_lea.vmem [#allocation4], %s1017
        %v1021 = vld [vmem:[%s1020] sm:$0xff]
        %v1022 = vmul.f32 %v1019, %v1021
        %s1023 = scalar_lea.vmem [#allocation6], %s1017
        %v1024 = vld [vmem:[%s1023] sm:$0xff]
        %1025 = vxpose.xlu0.b32.start [1/16] %v1024, 128
        %1026 = vxpose.xlu0.b32.cont [2/16] 0.0, 128
        %1027 = vxpose.xlu0.b32.cont [3/16] 0.0, 128
        %1028 = vxpose.xlu0.b32.cont [4/16] 0.0, 128
        %1029 = vxpose.xlu0.b32.cont [5/16] 0.0, 128
        %1030 = vxpose.xlu0.b32.cont [6/16] 0.0, 128
        %1031 = vxpose.xlu0.b32.cont [7/16] 0.0, 128
        %1032 = vxpose.xlu0.b32.cont [8/16] 0.0, 128
        %1033 = vxpose.xlu0.b32.cont [9/16] 0.0, 128
        %1034 = vxpose.xlu0.b32.cont [10/16] 0.0, 128
        %1035 = vxpose.xlu0.b32.cont [11/16] 0.0, 128
        %1036 = vxpose.xlu0.b32.cont [12/16] 0.0, 128
        %1037 = vxpose.xlu0.b32.cont [13/16] 0.0, 128
        %1038 = vxpose.xlu0.b32.cont [14/16] 0.0, 128
        %1039 = vxpose.xlu0.b32.cont [15/16] 0.0, 128
        %1040 = vxpose.xlu0.b32.end [16/16] 0.0, 128
        %v1041 = vpop.trf.xlu0
        %v1042 = vpop.trf.xlu0
        %v1043 = vpop.trf.xlu0
        %v1044 = vpop.trf.xlu0
        %v1045 = vpop.trf.xlu0
        %v1046 = vpop.trf.xlu0
        %v1047 = vpop.trf.xlu0
        %v1048 = vpop.trf.xlu0
        %v1049 = vpop.trf.xlu0
        %v1050 = vpop.trf.xlu0
        %v1051 = vpop.trf.xlu0
        %v1052 = vpop.trf.xlu0
        %v1053 = vpop.trf.xlu0
        %v1054 = vpop.trf.xlu0
        %v1055 = vpop.trf.xlu0
        %v1056 = vpop.trf.xlu0
        %v1057 = vld [vmem:[#allocation8] sm:$0xff]
        %v1058 = vld [vmem:[#allocation8 + $0x8] sm:$0xff]
        %v1059 = vlaneseq
        %v1060 = vshrl.u32 %v1059, 7
        %v1061 = vsub.s32 0, %v1060
        %v1062 = vrot.slane %v1019, %v1061
        %v1063 = vmul.f32 %v1062, %v1007
        %v1064 = vmul.f32 %v1062, %v1008
        %v1065 = vmul.f32 %v1063, 1.442695
        %v1066 = vpow.pop %v1065
        %v1067 = vmul.f32 %v1064, 1.442695
        %v1068 = vpow.pop %v1067
        %1070 = vset.pattern.permute.xlu0 0
        %1071 = vperm.xlu0 %1070, %v1041
        %v1072 = vpop.permute.xlu0 %1071
        %1075 = vset.pattern.permute.xlu0 0
        %1076 = vperm.xlu0 %1075, %v1042
        %v1077 = vpop.permute.xlu0 %1076
        %v1079 = vlaneseq
        %v1080 = vshrl.u32 %v1079, 7
        %v1081 = vsub.s32 0, %v1080
        %v1082 = vrot.slane %v1022, %v1081
        %v1083 = vmul.f32 %v1072, %v1082
        %v1084 = vmul.f32 %v1077, %v1082
        %v1085 = vmul.f32 %v1066, %v1057
        %v1086 = vmul.f32 %v1068, %v1058
        %v1087 = vadd.f32 %v1085, %v1083
        %v1088 = vadd.f32 %v1086, %v1084
        %1090 = vrot.lane.b32.xlu0 %v1024, 112
        %v1091 = vpop.permute.xlu0 %1090
        %vm1092 = vcmask 130048
        %v1093 = vsel %vm1092, %v1091, 0
        %1095 = vmatprep.subr.mxu0 0.0
        %1096 = vmatpush1.msra.mxu0 0.0
        %1097 = vmatprep.subr.mxu0 0.0
        %1098 = vmatpush1.msra.mxu0 0.0
        %1099 = vmatprep.subr.mxu0 0.0
        %1100 = vmatpush1.msra.mxu0 0.0
        %1101 = vmatprep.subr.mxu0 0.0
        %1102 = vmatpush1.msra.mxu0 0.0
        %1103 = vmatprep.subr.mxu0 0.0
        %1104 = vmatpush1.msra.mxu0 0.0
        %1105 = vmatprep.subr.mxu0 0.0
        %1106 = vmatpush1.msra.mxu0 0.0
        %1107 = vmatprep.subr.mxu0 0.0
        %1108 = vmatpush1.msra.mxu0 0.0
        %1109 = vmatprep.subr.mxu0 0.0
        %1110 = vmatpush1.msra.mxu0 0.0
        %1111 = vmatprep.subr.mxu0 0.0
        %1112 = vmatpush1.msra.mxu0 0.0
        %1113 = vmatprep.subr.mxu0 0.0
        %1114 = vmatpush1.msra.mxu0 0.0
        %1115 = vmatprep.subr.mxu0 0.0
        %1116 = vmatpush1.msra.mxu0 0.0
        %1117 = vmatprep.subr.mxu0 0.0
        %1118 = vmatpush1.msra.mxu0 0.0
        %1119 = vmatprep.subr.mxu0 0.0
        %1120 = vmatpush1.msra.mxu0 0.0
        %1121 = vmatprep.subr.mxu0 0.0
        %1122 = vmatpush1.msra.mxu0 0.0
        %1123 = vmatprep.subr.mxu0 0.0
        %1124 = vmatpush1.msra.mxu0 %v1088
        %1125 = vmatprep.subr.mxu0 0.0
        %1126 = vmatpush1.msra.mxu0 %v1087
        %1127 = vmatprep.subr.mxu0 0.0
        %1128 = vmatpush2.msra.mxu0 0.0
        %1129 = vmatprep.subr.mxu0 0.0
        %1130 = vmatpush2.msra.mxu0 0.0
        %1131 = vmatprep.subr.mxu0 0.0
        %1132 = vmatpush2.msra.mxu0 0.0
        %1133 = vmatprep.subr.mxu0 0.0
        %1134 = vmatpush2.msra.mxu0 0.0
        %1135 = vmatprep.subr.mxu0 0.0
        %1136 = vmatpush2.msra.mxu0 0.0
        %1137 = vmatprep.subr.mxu0 0.0
        %1138 = vmatpush2.msra.mxu0 0.0
        %1139 = vmatprep.subr.mxu0 0.0
        %1140 = vmatpush2.msra.mxu0 0.0
        %1141 = vmatprep.subr.mxu0 0.0
        %1142 = vmatpush2.msra.mxu0 0.0
        %1143 = vmatprep.subr.mxu0 0.0
        %1144 = vmatpush2.msra.mxu0 0.0
        %1145 = vmatprep.subr.mxu0 0.0
        %1146 = vmatpush2.msra.mxu0 0.0
        %1147 = vmatprep.subr.mxu0 0.0
        %1148 = vmatpush2.msra.mxu0 0.0
        %1149 = vmatprep.subr.mxu0 0.0
        %1150 = vmatpush2.msra.mxu0 0.0
        %1151 = vmatprep.subr.mxu0 0.0
        %1152 = vmatpush2.msra.mxu0 0.0
        %1153 = vmatprep.subr.mxu0 0.0
        %1154 = vmatpush2.msra.mxu0 0.0
        %1155 = vmatprep.subr.mxu0 0.0
        %1156 = vmatpush2.msra.mxu0 0.0
        %1157 = vmatprep.subr.mxu0 0.0
        %1158 = vmatpush2.msra.mxu0 0.0
        %1159 = vmatprep.mubr.f32.mxu0 0.0
        %1160 = vmatmul.mubr.f32.gmra.mxu0 %v1093
        %v1161 = vpop.f32.mrf.mxu0
        %v1162 = vadd.f32 0.0, %v1161
        %v1163 = vpop.f32.mrf.mxu0
        %1164 = vdwg.mxu0
        %v1165 = vlaneseq
        %v1166 = vshrl.u32 %v1165, 7
        %v1167 = vsub.s32 1, %v1166
        %v1168 = vrot.slane %v1019, %v1167
        %v1169 = vmul.f32 %v1168, %v1007
        %v1170 = vmul.f32 %v1168, %v1008
        %v1171 = vmul.f32 %v1169, 1.442695
        %v1172 = vpow.pop %v1171
        %v1173 = vmul.f32 %v1170, 1.442695
        %v1174 = vpow.pop %v1173
        %1175 = vset.pattern.permute.xlu0 1
        %1176 = vperm.xlu0 %1175, %v1041
        %v1177 = vpop.permute.xlu0 %1176
        %1179 = vset.pattern.permute.xlu0 1
        %1180 = vperm.xlu0 %1179, %v1042
        %v1181 = vpop.permute.xlu0 %1180
        %v1183 = vlaneseq
        %v1184 = vshrl.u32 %v1183, 7
        %v1185 = vsub.s32 1, %v1184
        %v1186 = vrot.slane %v1022, %v1185
        %v1187 = vmul.f32 %v1177, %v1186
        %v1188 = vmul.f32 %v1181, %v1186
        %v1189 = vmul.f32 %v1172, %v1087
        %v1190 = vmul.f32 %v1174, %v1088
        %v1191 = vadd.f32 %v1189, %v1187
        %v1192 = vadd.f32 %v1190, %v1188
        %v1193 = vrot.slane %v1024, 1
        %1194 = vrot.lane.b32.xlu0 %v1193, 112
        %v1195 = vpop.permute.xlu0 %1194
        %v1196 = vsel %vm1092, %v1195, 0
        %1198 = vmatprep.subr.mxu0 0.0
        %1199 = vmatpush1.msra.mxu0 0.0
        %1200 = vmatprep.subr.mxu0 0.0
        %1201 = vmatpush1.msra.mxu0 0.0
        %1202 = vmatprep.subr.mxu0 0.0
        %1203 = vmatpush1.msra.mxu0 0.0
        %1204 = vmatprep.subr.mxu0 0.0
        %1205 = vmatpush1.msra.mxu0 0.0
        %1206 = vmatprep.subr.mxu0 0.0
        %1207 = vmatpush1.msra.mxu0 0.0
        %1208 = vmatprep.subr.mxu0 0.0
        %1209 = vmatpush1.msra.mxu0 0.0
        %1210 = vmatprep.subr.mxu0 0.0
        %1211 = vmatpush1.msra.mxu0 0.0
        %1212 = vmatprep.subr.mxu0 0.0
        %1213 = vmatpush1.msra.mxu0 0.0
        %1214 = vmatprep.subr.mxu0 0.0
        %1215 = vmatpush1.msra.mxu0 0.0
        %1216 = vmatprep.subr.mxu0 0.0
        %1217 = vmatpush1.msra.mxu0 0.0
        %1218 = vmatprep.subr.mxu0 0.0
        %1219 = vmatpush1.msra.mxu0 0.0
        %1220 = vmatprep.subr.mxu0 0.0
        %1221 = vmatpush1.msra.mxu0 0.0
        %1222 = vmatprep.subr.mxu0 0.0
        %1223 = vmatpush1.msra.mxu0 0.0
        %1224 = vmatprep.subr.mxu0 0.0
        %1225 = vmatpush1.msra.mxu0 0.0
        %1226 = vmatprep.subr.mxu0 0.0
        %1227 = vmatpush1.msra.mxu0 %v1192
        %1228 = vmatprep.subr.mxu0 0.0
        %1229 = vmatpush1.msra.mxu0 %v1191
        %1230 = vmatprep.subr.mxu0 0.0
        %1231 = vmatpush2.msra.mxu0 0.0
        %1232 = vmatprep.subr.mxu0 0.0
        %1233 = vmatpush2.msra.mxu0 0.0
        %1234 = vmatprep.subr.mxu0 0.0
        %1235 = vmatpush2.msra.mxu0 0.0
        %1236 = vmatprep.subr.mxu0 0.0
        %1237 = vmatpush2.msra.mxu0 0.0
        %1238 = vmatprep.subr.mxu0 0.0
        %1239 = vmatpush2.msra.mxu0 0.0
        %1240 = vmatprep.subr.mxu0 0.0
        %1241 = vmatpush2.msra.mxu0 0.0
        %1242 = vmatprep.subr.mxu0 0.0
        %1243 = vmatpush2.msra.mxu0 0.0
        %1244 = vmatprep.subr.mxu0 0.0
        %1245 = vmatpush2.msra.mxu0 0.0
        %1246 = vmatprep.subr.mxu0 0.0
        %1247 = vmatpush2.msra.mxu0 0.0
        %1248 = vmatprep.subr.mxu0 0.0
        %1249 = vmatpush2.msra.mxu0 0.0
        %1250 = vmatprep.subr.mxu0 0.0
        %1251 = vmatpush2.msra.mxu0 0.0
        %1252 = vmatprep.subr.mxu0 0.0
        %1253 = vmatpush2.msra.mxu0 0.0
        %1254 = vmatprep.subr.mxu0 0.0
        %1255 = vmatpush2.msra.mxu0 0.0
        %1256 = vmatprep.subr.mxu0 0.0
        %1257 = vmatpush2.msra.mxu0 0.0
        %1258 = vmatprep.subr.mxu0 0.0
        %1259 = vmatpush2.msra.mxu0 0.0
        %1260 = vmatprep.subr.mxu0 0.0
        %1261 = vmatpush2.msra.mxu0 0.0
        %1262 = vmatprep.mubr.f32.mxu0 0.0
        %1263 = vmatmul.mubr.f32.gmra.mxu0 %v1196
        %v1264 = vpop.f32.mrf.mxu0
        %v1265 = vadd.f32 0.0, %v1264
        %v1266 = vpop.f32.mrf.mxu0
        %1267 = vdwg.mxu0
        %v1268 = vlaneseq
        %v1269 = vshrl.u32 %v1268, 7
        %v1270 = vsub.s32 2, %v1269
        %v1271 = vrot.slane %v1019, %v1270
        %v1272 = vmul.f32 %v1271, %v1007
        %v1273 = vmul.f32 %v1271, %v1008
        %v1274 = vmul.f32 %v1272, 1.442695
        %v1275 = vpow.pop %v1274
        %v1276 = vmul.f32 %v1273, 1.442695
        %v1277 = vpow.pop %v1276
        %1278 = vset.pattern.permute.xlu0 2
        %1279 = vperm.xlu0 %1278, %v1041
        %v1280 = vpop.permute.xlu0 %1279
        %1282 = vset.pattern.permute.xlu0 2
        %1283 = vperm.xlu0 %1282, %v1042
        %v1284 = vpop.permute.xlu0 %1283
        %v1286 = vlaneseq
        %v1287 = vshrl.u32 %v1286, 7
        %v1288 = vsub.s32 2, %v1287
        %v1289 = vrot.slane %v1022, %v1288
        %v1290 = vmul.f32 %v1280, %v1289
        %v1291 = vmul.f32 %v1284, %v1289
        %v1292 = vmul.f32 %v1275, %v1191
        %v1293 = vmul.f32 %v1277, %v1192
        %v1294 = vadd.f32 %v1292, %v1290
        %v1295 = vadd.f32 %v1293, %v1291
        %v1296 = vrot.slane %v1024, 2
        %1297 = vrot.lane.b32.xlu0 %v1296, 112
        %v1298 = vpop.permute.xlu0 %1297
        %v1299 = vsel %vm1092, %v1298, 0
        %1301 = vmatprep.subr.mxu0 0.0
        %1302 = vmatpush1.msra.mxu0 0.0
        %1303 = vmatprep.subr.mxu0 0.0
        %1304 = vmatpush1.msra.mxu0 0.0
        %1305 = vmatprep.subr.mxu0 0.0
        %1306 = vmatpush1.msra.mxu0 0.0
        %1307 = vmatprep.subr.mxu0 0.0
        %1308 = vmatpush1.msra.mxu0 0.0
        %1309 = vmatprep.subr.mxu0 0.0
        %1310 = vmatpush1.msra.mxu0 0.0
        %1311 = vmatprep.subr.mxu0 0.0
        %1312 = vmatpush1.msra.mxu0 0.0
        %1313 = vmatprep.subr.mxu0 0.0
        %1314 = vmatpush1.msra.mxu0 0.0
        %1315 = vmatprep.subr.mxu0 0.0
        %1316 = vmatpush1.msra.mxu0 0.0
        %1317 = vmatprep.subr.mxu0 0.0
        %1318 = vmatpush1.msra.mxu0 0.0
        %1319 = vmatprep.subr.mxu0 0.0
        %1320 = vmatpush1.msra.mxu0 0.0
        %1321 = vmatprep.subr.mxu0 0.0
        %1322 = vmatpush1.msra.mxu0 0.0
        %1323 = vmatprep.subr.mxu0 0.0
        %1324 = vmatpush1.msra.mxu0 0.0
        %1325 = vmatprep.subr.mxu0 0.0
        %1326 = vmatpush1.msra.mxu0 0.0
        %1327 = vmatprep.subr.mxu0 0.0
        %1328 = vmatpush1.msra.mxu0 0.0
        %1329 = vmatprep.subr.mxu0 0.0
        %1330 = vmatpush1.msra.mxu0 %v1295
        %1331 = vmatprep.subr.mxu0 0.0
        %1332 = vmatpush1.msra.mxu0 %v1294
        %1333 = vmatprep.subr.mxu0 0.0
        %1334 = vmatpush2.msra.mxu0 0.0
        %1335 = vmatprep.subr.mxu0 0.0
        %1336 = vmatpush2.msra.mxu0 0.0
        %1337 = vmatprep.subr.mxu0 0.0
        %1338 = vmatpush2.msra.mxu0 0.0
        %1339 = vmatprep.subr.mxu0 0.0
        %1340 = vmatpush2.msra.mxu0 0.0
        %1341 = vmatprep.subr.mxu0 0.0
        %1342 = vmatpush2.msra.mxu0 0.0
        %1343 = vmatprep.subr.mxu0 0.0
        %1344 = vmatpush2.msra.mxu0 0.0
        %1345 = vmatprep.subr.mxu0 0.0
        %1346 = vmatpush2.msra.mxu0 0.0
        %1347 = vmatprep.subr.mxu0 0.0
        %1348 = vmatpush2.msra.mxu0 0.0
        %1349 = vmatprep.subr.mxu0 0.0
        %1350 = vmatpush2.msra.mxu0 0.0
        %1351 = vmatprep.subr.mxu0 0.0
        %1352 = vmatpush2.msra.mxu0 0.0
        %1353 = vmatprep.subr.mxu0 0.0
        %1354 = vmatpush2.msra.mxu0 0.0
        %1355 = vmatprep.subr.mxu0 0.0
        %1356 = vmatpush2.msra.mxu0 0.0
        %1357 = vmatprep.subr.mxu0 0.0
        %1358 = vmatpush2.msra.mxu0 0.0
        %1359 = vmatprep.subr.mxu0 0.0
        %1360 = vmatpush2.msra.mxu0 0.0
        %1361 = vmatprep.subr.mxu0 0.0
        %1362 = vmatpush2.msra.mxu0 0.0
        %1363 = vmatprep.subr.mxu0 0.0
        %1364 = vmatpush2.msra.mxu0 0.0
        %1365 = vmatprep.mubr.f32.mxu0 0.0
        %1366 = vmatmul.mubr.f32.gmra.mxu0 %v1299
        %v1367 = vpop.f32.mrf.mxu0
        %v1368 = vadd.f32 0.0, %v1367
        %v1369 = vpop.f32.mrf.mxu0
        %1370 = vdwg.mxu0
        %v1371 = vlaneseq
        %v1372 = vshrl.u32 %v1371, 7
        %v1373 = vsub.s32 3, %v1372
        %v1374 = vrot.slane %v1019, %v1373
        %v1375 = vmul.f32 %v1374, %v1007
        %v1376 = vmul.f32 %v1374, %v1008
        %v1377 = vmul.f32 %v1375, 1.442695
        %v1378 = vpow.pop %v1377
        %v1379 = vmul.f32 %v1376, 1.442695
        %v1380 = vpow.pop %v1379
        %1381 = vset.pattern.permute.xlu0 3
        %1382 = vperm.xlu0 %1381, %v1041
        %v1383 = vpop.permute.xlu0 %1382
        %1385 = vset.pattern.permute.xlu0 3
        %1386 = vperm.xlu0 %1385, %v1042
        %v1387 = vpop.permute.xlu0 %1386
        %v1389 = vlaneseq
        %v1390 = vshrl.u32 %v1389, 7
        %v1391 = vsub.s32 3, %v1390
        %v1392 = vrot.slane %v1022, %v1391
        %v1393 = vmul.f32 %v1383, %v1392
        %v1394 = vmul.f32 %v1387, %v1392
        %v1395 = vmul.f32 %v1378, %v1294
        %v1396 = vmul.f32 %v1380, %v1295
        %v1397 = vadd.f32 %v1395, %v1393
        %v1398 = vadd.f32 %v1396, %v1394
        %v1399 = vrot.slane %v1024, 3
        %1400 = vrot.lane.b32.xlu0 %v1399, 112
        %v1401 = vpop.permute.xlu0 %1400
        %v1402 = vsel %vm1092, %v1401, 0
        %1404 = vmatprep.subr.mxu0 0.0
        %1405 = vmatpush1.msra.mxu0 0.0
        %1406 = vmatprep.subr.mxu0 0.0
        %1407 = vmatpush1.msra.mxu0 0.0
        %1408 = vmatprep.subr.mxu0 0.0
        %1409 = vmatpush1.msra.mxu0 0.0
        %1410 = vmatprep.subr.mxu0 0.0
        %1411 = vmatpush1.msra.mxu0 0.0
        %1412 = vmatprep.subr.mxu0 0.0
        %1413 = vmatpush1.msra.mxu0 0.0
        %1414 = vmatprep.subr.mxu0 0.0
        %1415 = vmatpush1.msra.mxu0 0.0
        %1416 = vmatprep.subr.mxu0 0.0
        %1417 = vmatpush1.msra.mxu0 0.0
        %1418 = vmatprep.subr.mxu0 0.0
        %1419 = vmatpush1.msra.mxu0 0.0
        %1420 = vmatprep.subr.mxu0 0.0
        %1421 = vmatpush1.msra.mxu0 0.0
        %1422 = vmatprep.subr.mxu0 0.0
        %1423 = vmatpush1.msra.mxu0 0.0
        %1424 = vmatprep.subr.mxu0 0.0
        %1425 = vmatpush1.msra.mxu0 0.0
        %1426 = vmatprep.subr.mxu0 0.0
        %1427 = vmatpush1.msra.mxu0 0.0
        %1428 = vmatprep.subr.mxu0 0.0
        %1429 = vmatpush1.msra.mxu0 0.0
        %1430 = vmatprep.subr.mxu0 0.0
        %1431 = vmatpush1.msra.mxu0 0.0
        %1432 = vmatprep.subr.mxu0 0.0
        %1433 = vmatpush1.msra.mxu0 %v1398
        %1434 = vmatprep.subr.mxu0 0.0
        %1435 = vmatpush1.msra.mxu0 %v1397
        %1436 = vmatprep.subr.mxu0 0.0
        %1437 = vmatpush2.msra.mxu0 0.0
        %1438 = vmatprep.subr.mxu0 0.0
        %1439 = vmatpush2.msra.mxu0 0.0
        %1440 = vmatprep.subr.mxu0 0.0
        %1441 = vmatpush2.msra.mxu0 0.0
        %1442 = vmatprep.subr.mxu0 0.0
        %1443 = vmatpush2.msra.mxu0 0.0
        %1444 = vmatprep.subr.mxu0 0.0
        %1445 = vmatpush2.msra.mxu0 0.0
        %1446 = vmatprep.subr.mxu0 0.0
        %1447 = vmatpush2.msra.mxu0 0.0
        %1448 = vmatprep.subr.mxu0 0.0
        %1449 = vmatpush2.msra.mxu0 0.0
        %1450 = vmatprep.subr.mxu0 0.0
        %1451 = vmatpush2.msra.mxu0 0.0
        %1452 = vmatprep.subr.mxu0 0.0
        %1453 = vmatpush2.msra.mxu0 0.0
        %1454 = vmatprep.subr.mxu0 0.0
        %1455 = vmatpush2.msra.mxu0 0.0
        %1456 = vmatprep.subr.mxu0 0.0
        %1457 = vmatpush2.msra.mxu0 0.0
        %1458 = vmatprep.subr.mxu0 0.0
        %1459 = vmatpush2.msra.mxu0 0.0
        %1460 = vmatprep.subr.mxu0 0.0
        %1461 = vmatpush2.msra.mxu0 0.0
        %1462 = vmatprep.subr.mxu0 0.0
        %1463 = vmatpush2.msra.mxu0 0.0
        %1464 = vmatprep.subr.mxu0 0.0
        %1465 = vmatpush2.msra.mxu0 0.0
        %1466 = vmatprep.subr.mxu0 0.0
        %1467 = vmatpush2.msra.mxu0 0.0
        %1468 = vmatprep.mubr.f32.mxu0 0.0
        %1469 = vmatmul.mubr.f32.gmra.mxu0 %v1402
        %v1470 = vpop.f32.mrf.mxu0
        %v1471 = vadd.f32 0.0, %v1470
        %v1472 = vpop.f32.mrf.mxu0
        %1473 = vdwg.mxu0
        %v1474 = vlaneseq
        %v1475 = vshrl.u32 %v1474, 7
        %v1476 = vsub.s32 4, %v1475
        %v1477 = vrot.slane %v1019, %v1476
        %v1478 = vmul.f32 %v1477, %v1007
        %v1479 = vmul.f32 %v1477, %v1008
        %v1480 = vmul.f32 %v1478, 1.442695
        %v1481 = vpow.pop %v1480
        %v1482 = vmul.f32 %v1479, 1.442695
        %v1483 = vpow.pop %v1482
        %1484 = vset.pattern.permute.xlu0 4
        %1485 = vperm.xlu0 %1484, %v1041
        %v1486 = vpop.permute.xlu0 %1485
        %1488 = vset.pattern.permute.xlu0 4
        %1489 = vperm.xlu0 %1488, %v1042
        %v1490 = vpop.permute.xlu0 %1489
        %v1492 = vlaneseq
        %v1493 = vshrl.u32 %v1492, 7
        %v1494 = vsub.s32 4, %v1493
        %v1495 = vrot.slane %v1022, %v1494
        %v1496 = vmul.f32 %v1486, %v1495
        %v1497 = vmul.f32 %v1490, %v1495
        %v1498 = vmul.f32 %v1481, %v1397
        %v1499 = vmul.f32 %v1483, %v1398
        %v1500 = vadd.f32 %v1498, %v1496
        %v1501 = vadd.f32 %v1499, %v1497
        %v1502 = vrot.slane %v1024, 4
        %1503 = vrot.lane.b32.xlu0 %v1502, 112
        %v1504 = vpop.permute.xlu0 %1503
        %v1505 = vsel %vm1092, %v1504, 0
        %1507 = vmatprep.subr.mxu0 0.0
        %1508 = vmatpush1.msra.mxu0 0.0
        %1509 = vmatprep.subr.mxu0 0.0
        %1510 = vmatpush1.msra.mxu0 0.0
        %1511 = vmatprep.subr.mxu0 0.0
        %1512 = vmatpush1.msra.mxu0 0.0
        %1513 = vmatprep.subr.mxu0 0.0
        %1514 = vmatpush1.msra.mxu0 0.0
        %1515 = vmatprep.subr.mxu0 0.0
        %1516 = vmatpush1.msra.mxu0 0.0
        %1517 = vmatprep.subr.mxu0 0.0
        %1518 = vmatpush1.msra.mxu0 0.0
        %1519 = vmatprep.subr.mxu0 0.0
        %1520 = vmatpush1.msra.mxu0 0.0
        %1521 = vmatprep.subr.mxu0 0.0
        %1522 = vmatpush1.msra.mxu0 0.0
        %1523 = vmatprep.subr.mxu0 0.0
        %1524 = vmatpush1.msra.mxu0 0.0
        %1525 = vmatprep.subr.mxu0 0.0
        %1526 = vmatpush1.msra.mxu0 0.0
        %1527 = vmatprep.subr.mxu0 0.0
        %1528 = vmatpush1.msra.mxu0 0.0
        %1529 = vmatprep.subr.mxu0 0.0
        %1530 = vmatpush1.msra.mxu0 0.0
        %1531 = vmatprep.subr.mxu0 0.0
        %1532 = vmatpush1.msra.mxu0 0.0
        %1533 = vmatprep.subr.mxu0 0.0
        %1534 = vmatpush1.msra.mxu0 0.0
        %1535 = vmatprep.subr.mxu0 0.0
        %1536 = vmatpush1.msra.mxu0 %v1501
        %1537 = vmatprep.subr.mxu0 0.0
        %1538 = vmatpush1.msra.mxu0 %v1500
        %1539 = vmatprep.subr.mxu0 0.0
        %1540 = vmatpush2.msra.mxu0 0.0
        %1541 = vmatprep.subr.mxu0 0.0
        %1542 = vmatpush2.msra.mxu0 0.0
        %1543 = vmatprep.subr.mxu0 0.0
        %1544 = vmatpush2.msra.mxu0 0.0
        %1545 = vmatprep.subr.mxu0 0.0
        %1546 = vmatpush2.msra.mxu0 0.0
        %1547 = vmatprep.subr.mxu0 0.0
        %1548 = vmatpush2.msra.mxu0 0.0
        %1549 = vmatprep.subr.mxu0 0.0
        %1550 = vmatpush2.msra.mxu0 0.0
        %1551 = vmatprep.subr.mxu0 0.0
        %1552 = vmatpush2.msra.mxu0 0.0
        %1553 = vmatprep.subr.mxu0 0.0
        %1554 = vmatpush2.msra.mxu0 0.0
        %1555 = vmatprep.subr.mxu0 0.0
        %1556 = vmatpush2.msra.mxu0 0.0
        %1557 = vmatprep.subr.mxu0 0.0
        %1558 = vmatpush2.msra.mxu0 0.0
        %1559 = vmatprep.subr.mxu0 0.0
        %1560 = vmatpush2.msra.mxu0 0.0
        %1561 = vmatprep.subr.mxu0 0.0
        %1562 = vmatpush2.msra.mxu0 0.0
        %1563 = vmatprep.subr.mxu0 0.0
        %1564 = vmatpush2.msra.mxu0 0.0
        %1565 = vmatprep.subr.mxu0 0.0
        %1566 = vmatpush2.msra.mxu0 0.0
        %1567 = vmatprep.subr.mxu0 0.0
        %1568 = vmatpush2.msra.mxu0 0.0
        %1569 = vmatprep.subr.mxu0 0.0
        %1570 = vmatpush2.msra.mxu0 0.0
        %1571 = vmatprep.mubr.f32.mxu0 0.0
        %1572 = vmatmul.mubr.f32.gmra.mxu0 %v1505
        %v1573 = vpop.f32.mrf.mxu0
        %v1574 = vadd.f32 0.0, %v1573
        %v1575 = vpop.f32.mrf.mxu0
        %1576 = vdwg.mxu0
        %v1577 = vlaneseq
        %v1578 = vshrl.u32 %v1577, 7
        %v1579 = vsub.s32 5, %v1578
        %v1580 = vrot.slane %v1019, %v1579
        %v1581 = vmul.f32 %v1580, %v1007
        %v1582 = vmul.f32 %v1580, %v1008
        %v1583 = vmul.f32 %v1581, 1.442695
        %v1584 = vpow.pop %v1583
        %v1585 = vmul.f32 %v1582, 1.442695
        %v1586 = vpow.pop %v1585
        %1587 = vset.pattern.permute.xlu0 5
        %1588 = vperm.xlu0 %1587, %v1041
        %v1589 = vpop.permute.xlu0 %1588
        %1591 = vset.pattern.permute.xlu0 5
        %1592 = vperm.xlu0 %1591, %v1042
        %v1593 = vpop.permute.xlu0 %1592
        %v1595 = vlaneseq
        %v1596 = vshrl.u32 %v1595, 7
        %v1597 = vsub.s32 5, %v1596
        %v1598 = vrot.slane %v1022, %v1597
        %v1599 = vmul.f32 %v1589, %v1598
        %v1600 = vmul.f32 %v1593, %v1598
        %v1601 = vmul.f32 %v1584, %v1500
        %v1602 = vmul.f32 %v1586, %v1501
        %v1603 = vadd.f32 %v1601, %v1599
        %v1604 = vadd.f32 %v1602, %v1600
        %v1605 = vrot.slane %v1024, 5
        %1606 = vrot.lane.b32.xlu0 %v1605, 112
        %v1607 = vpop.permute.xlu0 %1606
        %v1608 = vsel %vm1092, %v1607, 0
        %1610 = vmatprep.subr.mxu0 0.0
        %1611 = vmatpush1.msra.mxu0 0.0
        %1612 = vmatprep.subr.mxu0 0.0
        %1613 = vmatpush1.msra.mxu0 0.0
        %1614 = vmatprep.subr.mxu0 0.0
        %1615 = vmatpush1.msra.mxu0 0.0
        %1616 = vmatprep.subr.mxu0 0.0
        %1617 = vmatpush1.msra.mxu0 0.0
        %1618 = vmatprep.subr.mxu0 0.0
        %1619 = vmatpush1.msra.mxu0 0.0
        %1620 = vmatprep.subr.mxu0 0.0
        %1621 = vmatpush1.msra.mxu0 0.0
        %1622 = vmatprep.subr.mxu0 0.0
        %1623 = vmatpush1.msra.mxu0 0.0
        %1624 = vmatprep.subr.mxu0 0.0
        %1625 = vmatpush1.msra.mxu0 0.0
        %1626 = vmatprep.subr.mxu0 0.0
        %1627 = vmatpush1.msra.mxu0 0.0
        %1628 = vmatprep.subr.mxu0 0.0
        %1629 = vmatpush1.msra.mxu0 0.0
        %1630 = vmatprep.subr.mxu0 0.0
        %1631 = vmatpush1.msra.mxu0 0.0
        %1632 = vmatprep.subr.mxu0 0.0
        %1633 = vmatpush1.msra.mxu0 0.0
        %1634 = vmatprep.subr.mxu0 0.0
        %1635 = vmatpush1.msra.mxu0 0.0
        %1636 = vmatprep.subr.mxu0 0.0
        %1637 = vmatpush1.msra.mxu0 0.0
        %1638 = vmatprep.subr.mxu0 0.0
        %1639 = vmatpush1.msra.mxu0 %v1604
        %1640 = vmatprep.subr.mxu0 0.0
        %1641 = vmatpush1.msra.mxu0 %v1603
        %1642 = vmatprep.subr.mxu0 0.0
        %1643 = vmatpush2.msra.mxu0 0.0
        %1644 = vmatprep.subr.mxu0 0.0
        %1645 = vmatpush2.msra.mxu0 0.0
        %1646 = vmatprep.subr.mxu0 0.0
        %1647 = vmatpush2.msra.mxu0 0.0
        %1648 = vmatprep.subr.mxu0 0.0
        %1649 = vmatpush2.msra.mxu0 0.0
        %1650 = vmatprep.subr.mxu0 0.0
        %1651 = vmatpush2.msra.mxu0 0.0
        %1652 = vmatprep.subr.mxu0 0.0
        %1653 = vmatpush2.msra.mxu0 0.0
        %1654 = vmatprep.subr.mxu0 0.0
        %1655 = vmatpush2.msra.mxu0 0.0
        %1656 = vmatprep.subr.mxu0 0.0
        %1657 = vmatpush2.msra.mxu0 0.0
        %1658 = vmatprep.subr.mxu0 0.0
        %1659 = vmatpush2.msra.mxu0 0.0
        %1660 = vmatprep.subr.mxu0 0.0
        %1661 = vmatpush2.msra.mxu0 0.0
        %1662 = vmatprep.subr.mxu0 0.0
        %1663 = vmatpush2.msra.mxu0 0.0
        %1664 = vmatprep.subr.mxu0 0.0
        %1665 = vmatpush2.msra.mxu0 0.0
        %1666 = vmatprep.subr.mxu0 0.0
        %1667 = vmatpush2.msra.mxu0 0.0
        %1668 = vmatprep.subr.mxu0 0.0
        %1669 = vmatpush2.msra.mxu0 0.0
        %1670 = vmatprep.subr.mxu0 0.0
        %1671 = vmatpush2.msra.mxu0 0.0
        %1672 = vmatprep.subr.mxu0 0.0
        %1673 = vmatpush2.msra.mxu0 0.0
        %1674 = vmatprep.mubr.f32.mxu0 0.0
        %1675 = vmatmul.mubr.f32.gmra.mxu0 %v1608
        %v1676 = vpop.f32.mrf.mxu0
        %v1677 = vadd.f32 0.0, %v1676
        %v1678 = vpop.f32.mrf.mxu0
        %1679 = vdwg.mxu0
        %v1680 = vlaneseq
        %v1681 = vshrl.u32 %v1680, 7
        %v1682 = vsub.s32 6, %v1681
        %v1683 = vrot.slane %v1019, %v1682
        %v1684 = vmul.f32 %v1683, %v1007
        %v1685 = vmul.f32 %v1683, %v1008
        %v1686 = vmul.f32 %v1684, 1.442695
        %v1687 = vpow.pop %v1686
        %v1688 = vmul.f32 %v1685, 1.442695
        %v1689 = vpow.pop %v1688
        %1690 = vset.pattern.permute.xlu0 6
        %1691 = vperm.xlu0 %1690, %v1041
        %v1692 = vpop.permute.xlu0 %1691
        %1694 = vset.pattern.permute.xlu0 6
        %1695 = vperm.xlu0 %1694, %v1042
        %v1696 = vpop.permute.xlu0 %1695
        %v1698 = vlaneseq
        %v1699 = vshrl.u32 %v1698, 7
        %v1700 = vsub.s32 6, %v1699
        %v1701 = vrot.slane %v1022, %v1700
        %v1702 = vmul.f32 %v1692, %v1701
        %v1703 = vmul.f32 %v1696, %v1701
        %v1704 = vmul.f32 %v1687, %v1603
        %v1705 = vmul.f32 %v1689, %v1604
        %v1706 = vadd.f32 %v1704, %v1702
        %v1707 = vadd.f32 %v1705, %v1703
        %v1708 = vrot.slane %v1024, 6
        %1709 = vrot.lane.b32.xlu0 %v1708, 112
        %v1710 = vpop.permute.xlu0 %1709
        %v1711 = vsel %vm1092, %v1710, 0
        %1713 = vmatprep.subr.mxu0 0.0
        %1714 = vmatpush1.msra.mxu0 0.0
        %1715 = vmatprep.subr.mxu0 0.0
        %1716 = vmatpush1.msra.mxu0 0.0
        %1717 = vmatprep.subr.mxu0 0.0
        %1718 = vmatpush1.msra.mxu0 0.0
        %1719 = vmatprep.subr.mxu0 0.0
        %1720 = vmatpush1.msra.mxu0 0.0
        %1721 = vmatprep.subr.mxu0 0.0
        %1722 = vmatpush1.msra.mxu0 0.0
        %1723 = vmatprep.subr.mxu0 0.0
        %1724 = vmatpush1.msra.mxu0 0.0
        %1725 = vmatprep.subr.mxu0 0.0
        %1726 = vmatpush1.msra.mxu0 0.0
        %1727 = vmatprep.subr.mxu0 0.0
        %1728 = vmatpush1.msra.mxu0 0.0
        %1729 = vmatprep.subr.mxu0 0.0
        %1730 = vmatpush1.msra.mxu0 0.0
        %1731 = vmatprep.subr.mxu0 0.0
        %1732 = vmatpush1.msra.mxu0 0.0
        %1733 = vmatprep.subr.mxu0 0.0
        %1734 = vmatpush1.msra.mxu0 0.0
        %1735 = vmatprep.subr.mxu0 0.0
        %1736 = vmatpush1.msra.mxu0 0.0
        %1737 = vmatprep.subr.mxu0 0.0
        %1738 = vmatpush1.msra.mxu0 0.0
        %1739 = vmatprep.subr.mxu0 0.0
        %1740 = vmatpush1.msra.mxu0 0.0
        %1741 = vmatprep.subr.mxu0 0.0
        %1742 = vmatpush1.msra.mxu0 %v1707
        %1743 = vmatprep.subr.mxu0 0.0
        %1744 = vmatpush1.msra.mxu0 %v1706
        %1745 = vmatprep.subr.mxu0 0.0
        %1746 = vmatpush2.msra.mxu0 0.0
        %1747 = vmatprep.subr.mxu0 0.0
        %1748 = vmatpush2.msra.mxu0 0.0
        %1749 = vmatprep.subr.mxu0 0.0
        %1750 = vmatpush2.msra.mxu0 0.0
        %1751 = vmatprep.subr.mxu0 0.0
        %1752 = vmatpush2.msra.mxu0 0.0
        %1753 = vmatprep.subr.mxu0 0.0
        %1754 = vmatpush2.msra.mxu0 0.0
        %1755 = vmatprep.subr.mxu0 0.0
        %1756 = vmatpush2.msra.mxu0 0.0
        %1757 = vmatprep.subr.mxu0 0.0
        %1758 = vmatpush2.msra.mxu0 0.0
        %1759 = vmatprep.subr.mxu0 0.0
        %1760 = vmatpush2.msra.mxu0 0.0
        %1761 = vmatprep.subr.mxu0 0.0
        %1762 = vmatpush2.msra.mxu0 0.0
        %1763 = vmatprep.subr.mxu0 0.0
        %1764 = vmatpush2.msra.mxu0 0.0
        %1765 = vmatprep.subr.mxu0 0.0
        %1766 = vmatpush2.msra.mxu0 0.0
        %1767 = vmatprep.subr.mxu0 0.0
        %1768 = vmatpush2.msra.mxu0 0.0
        %1769 = vmatprep.subr.mxu0 0.0
        %1770 = vmatpush2.msra.mxu0 0.0
        %1771 = vmatprep.subr.mxu0 0.0
        %1772 = vmatpush2.msra.mxu0 0.0
        %1773 = vmatprep.subr.mxu0 0.0
        %1774 = vmatpush2.msra.mxu0 0.0
        %1775 = vmatprep.subr.mxu0 0.0
        %1776 = vmatpush2.msra.mxu0 0.0
        %1777 = vmatprep.mubr.f32.mxu0 0.0
        %1778 = vmatmul.mubr.f32.gmra.mxu0 %v1711
        %v1779 = vpop.f32.mrf.mxu0
        %v1780 = vadd.f32 0.0, %v1779
        %v1781 = vpop.f32.mrf.mxu0
        %1782 = vdwg.mxu0
        %v1783 = vlaneseq
        %v1784 = vshrl.u32 %v1783, 7
        %v1785 = vsub.s32 7, %v1784
        %v1786 = vrot.slane %v1019, %v1785
        %v1787 = vmul.f32 %v1786, %v1007
        %v1788 = vmul.f32 %v1786, %v1008
        %v1789 = vmul.f32 %v1787, 1.442695
        %v1790 = vpow.pop %v1789
        %v1791 = vmul.f32 %v1788, 1.442695
        %v1792 = vpow.pop %v1791
        %1793 = vset.pattern.permute.xlu0 7
        %1794 = vperm.xlu0 %1793, %v1041
        %v1795 = vpop.permute.xlu0 %1794
        %1797 = vset.pattern.permute.xlu0 7
        %1798 = vperm.xlu0 %1797, %v1042
        %v1799 = vpop.permute.xlu0 %1798
        %v1801 = vlaneseq
        %v1802 = vshrl.u32 %v1801, 7
        %v1803 = vsub.s32 7, %v1802
        %v1804 = vrot.slane %v1022, %v1803
        %v1805 = vmul.f32 %v1795, %v1804
        %v1806 = vmul.f32 %v1799, %v1804
        %v1807 = vmul.f32 %v1790, %v1706
        %v1808 = vmul.f32 %v1792, %v1707
        %v1809 = vadd.f32 %v1807, %v1805
        %v1810 = vadd.f32 %v1808, %v1806
        %v1811 = vrot.slane %v1024, 7
        %1812 = vrot.lane.b32.xlu0 %v1811, 112
        %v1813 = vpop.permute.xlu0 %1812
        %v1814 = vsel %vm1092, %v1813, 0
        %1816 = vmatprep.subr.mxu0 0.0
        %1817 = vmatpush1.msra.mxu0 0.0
        %1818 = vmatprep.subr.mxu0 0.0
        %1819 = vmatpush1.msra.mxu0 0.0
        %1820 = vmatprep.subr.mxu0 0.0
        %1821 = vmatpush1.msra.mxu0 0.0
        %1822 = vmatprep.subr.mxu0 0.0
        %1823 = vmatpush1.msra.mxu0 0.0
        %1824 = vmatprep.subr.mxu0 0.0
        %1825 = vmatpush1.msra.mxu0 0.0
        %1826 = vmatprep.subr.mxu0 0.0
        %1827 = vmatpush1.msra.mxu0 0.0
        %1828 = vmatprep.subr.mxu0 0.0
        %1829 = vmatpush1.msra.mxu0 0.0
        %1830 = vmatprep.subr.mxu0 0.0
        %1831 = vmatpush1.msra.mxu0 0.0
        %1832 = vmatprep.subr.mxu0 0.0
        %1833 = vmatpush1.msra.mxu0 0.0
        %1834 = vmatprep.subr.mxu0 0.0
        %1835 = vmatpush1.msra.mxu0 0.0
        %1836 = vmatprep.subr.mxu0 0.0
        %1837 = vmatpush1.msra.mxu0 0.0
        %1838 = vmatprep.subr.mxu0 0.0
        %1839 = vmatpush1.msra.mxu0 0.0
        %1840 = vmatprep.subr.mxu0 0.0
        %1841 = vmatpush1.msra.mxu0 0.0
        %1842 = vmatprep.subr.mxu0 0.0
        %1843 = vmatpush1.msra.mxu0 0.0
        %1844 = vmatprep.subr.mxu0 0.0
        %1845 = vmatpush1.msra.mxu0 %v1810
        %1846 = vmatprep.subr.mxu0 0.0
        %1847 = vmatpush1.msra.mxu0 %v1809
        %1848 = vmatprep.subr.mxu0 0.0
        %1849 = vmatpush2.msra.mxu0 0.0
        %1850 = vmatprep.subr.mxu0 0.0
        %1851 = vmatpush2.msra.mxu0 0.0
        %1852 = vmatprep.subr.mxu0 0.0
        %1853 = vmatpush2.msra.mxu0 0.0
        %1854 = vmatprep.subr.mxu0 0.0
        %1855 = vmatpush2.msra.mxu0 0.0
        %1856 = vmatprep.subr.mxu0 0.0
        %1857 = vmatpush2.msra.mxu0 0.0
        %1858 = vmatprep.subr.mxu0 0.0
        %1859 = vmatpush2.msra.mxu0 0.0
        %1860 = vmatprep.subr.mxu0 0.0
        %1861 = vmatpush2.msra.mxu0 0.0
        %1862 = vmatprep.subr.mxu0 0.0
        %1863 = vmatpush2.msra.mxu0 0.0
        %1864 = vmatprep.subr.mxu0 0.0
        %1865 = vmatpush2.msra.mxu0 0.0
        %1866 = vmatprep.subr.mxu0 0.0
        %1867 = vmatpush2.msra.mxu0 0.0
        %1868 = vmatprep.subr.mxu0 0.0
        %1869 = vmatpush2.msra.mxu0 0.0
        %1870 = vmatprep.subr.mxu0 0.0
        %1871 = vmatpush2.msra.mxu0 0.0
        %1872 = vmatprep.subr.mxu0 0.0
        %1873 = vmatpush2.msra.mxu0 0.0
        %1874 = vmatprep.subr.mxu0 0.0
        %1875 = vmatpush2.msra.mxu0 0.0
        %1876 = vmatprep.subr.mxu0 0.0
        %1877 = vmatpush2.msra.mxu0 0.0
        %1878 = vmatprep.subr.mxu0 0.0
        %1879 = vmatpush2.msra.mxu0 0.0
        %1880 = vmatprep.mubr.f32.mxu0 0.0
        %1881 = vmatmul.mubr.f32.gmra.mxu0 %v1814
        %v1882 = vpop.f32.mrf.mxu0
        %v1883 = vadd.f32 0.0, %v1882
        %v1884 = vpop.f32.mrf.mxu0
        %1885 = vdwg.mxu0
        %1886 = vst.msk [vmem:[#allocation8] sm:$0xff] %vm752, %v1809
        %1887 = vst.msk [vmem:[#allocation8 + $0x8] sm:$0xff] %vm752, %v1810
        %v1889 = vrot.slane %v1265, 7
        %v1892 = vrot.slane %v1368, 6
        %v1895 = vrot.slane %v1471, 5
        %v1898 = vrot.slane %v1574, 4
        %v1901 = vrot.slane %v1677, 3
        %v1904 = vrot.slane %v1780, 2
        %v1907 = vrot.slane %v1883, 1
        %vm1909 = vcmask 1040384
        %v1910 = vsel %vm1909, %v1162, %v1889
        %vm1911 = vcmask 1041408
        %v1912 = vsel %vm1911, %v1910, %v1892
        %vm1913 = vcmask 1042432
        %v1914 = vsel %vm1913, %v1912, %v1895
        %vm1915 = vcmask 1043456
        %v1916 = vsel %vm1915, %v1914, %v1898
        %vm1917 = vcmask 1044480
        %v1918 = vsel %vm1917, %v1916, %v1901
        %vm1919 = vcmask 1045504
        %v1920 = vsel %vm1919, %v1918, %v1904
        %vm1921 = vcmask 1046528
        %v1922 = vsel %vm1921, %v1920, %v1907
        %s1923 = scalar_lea.vmem [#allocation7], %s1017
        %1924 = vst.msk [vmem:[%s1923] sm:$0xff] %vm752, %v1922
      $region73: #{mamba_for_ner_forward.1} parent=63 // loop_footer
        %s1016 = sadd.s32 1, %s1012
      $region74: #{mamba_for_ner_forward.1} parent=63 // loop_footer_branch
        %1011 = sbr.rel target = $region70
      $region75: #{mamba_for_ner_forward.1} parent=63 // loop_exit
        _
      %v1925 = vld [vmem:[#allocation7] sm:$0xff]
      %v1926 = vld [vmem:[#allocation7 + $0x8] sm:$0xff]
      %v1927 = vld [vmem:[%s521 + $0x2] sm:$0x1]
      %v1928 = vlaneseq
      %v1929 = vshrl.u32 %v1928, 7
      %v1930 = vsub.s32 0, %v1929
      %v1931 = vrot.slane %v1927, %v1930
      %v1932 = vmul.f32 %v750, %v1931
      %v1933 = vmul.f32 %v751, %v1931
      %v1934 = vadd.f32 %v1925, %v1932
      %v1935 = vadd.f32 %v1926, %v1933
      %v1936 = vxor.u32 %v649, 2147483648
      %v1937 = vxor.u32 %v652, 2147483648
      %v1938 = vmul.f32 %v1936, 1.442695
      %v1939 = vpow.pop %v1938
      %v1940 = vmul.f32 %v1937, 1.442695
      %v1941 = vpow.pop %v1940
      %v1942 = vadd.f32 %v1939, 1.0
      %v1943 = vadd.f32 %v1941, 1.0
      %v1944 = vrcp.pop %v1942
      %v1945 = vmul.f32 1.0, %v1944
      %v1946 = vrcp.pop %v1943
      %v1947 = vmul.f32 1.0, %v1946
      %v1948 = vmul.f32 %v649, %v1945
      %v1949 = vmul.f32 %v652, %v1947
      %1952 = vrot.lane.b32.xlu0 %v1948, 64
      %v1953 = vpop.permute.xlu0 %1952
      %1954 = vrot.lane.b32.xlu0 %v1949, 64
      %v1955 = vpop.permute.xlu0 %1954
      %v1958 = vmul.f32 %v1934, %v1953
      %v1959 = vmul.f32 %v1935, %v1955
      %v1960 = vpack.c.bf16 %v1959, %v1958
      %v1961 = vld [vmem:[%s541] sm:$0xf]
      %v1962 = vld [vmem:[%s541 + $0x4] sm:$0xf]
      %v1963 = vld [vmem:[%s541 + $0x8] sm:$0xf]
      %v1964 = vld [vmem:[%s541 + $0xc] sm:$0xf]
      %v1965 = vld [vmem:[%s541 + $0x10] sm:$0xf]
      %v1966 = vld [vmem:[%s541 + $0x14] sm:$0xf]
      %v1967 = vld [vmem:[%s541 + $0x18] sm:$0xf]
      %v1968 = vld [vmem:[%s541 + $0x1c] sm:$0xf]
      %v1977 = vunpack.c.l.b16 %v1961
      %v1978 = vunpack.c.l.b16 %v1962
      %v1979 = vunpack.c.l.b16 %v1963
      %v1980 = vunpack.c.l.b16 %v1964
      %v1981 = vunpack.c.l.b16 %v1965
      %v1982 = vunpack.c.l.b16 %v1966
      %v1983 = vunpack.c.l.b16 %v1967
      %v1984 = vunpack.c.l.b16 %v1968
      %v1985 = vpack.c.b16 %v1978, %v1977
      %v1986 = vpack.c.b16 %v1980, %v1979
      %v1987 = vpack.c.b16 %v1982, %v1981
      %v1988 = vpack.c.b16 %v1984, %v1983
      %v1994 = vsel %vm752, %v1960, 0
      %1996 = vmatprep.subr.bf16.mxu0 0
      %1997 = vmatpush1.bf16.msra.mxu0 0
      %1998 = vmatprep.subr.bf16.mxu0 0
      %1999 = vmatpush1.bf16.msra.mxu0 0
      %2000 = vmatprep.subr.bf16.mxu0 0
      %2001 = vmatpush1.bf16.msra.mxu0 0
      %2002 = vmatprep.subr.bf16.mxu0 0
      %2003 = vmatpush1.bf16.msra.mxu0 0
      %2004 = vmatprep.subr.bf16.mxu0 0
      %2005 = vmatpush1.bf16.msra.mxu0 %v1988
      %2006 = vmatprep.subr.bf16.mxu0 0
      %2007 = vmatpush1.bf16.msra.mxu0 %v1987
      %2008 = vmatprep.subr.bf16.mxu0 0
      %2009 = vmatpush1.bf16.msra.mxu0 %v1986
      %2010 = vmatprep.subr.bf16.mxu0 0
      %2011 = vmatpush1.bf16.msra.mxu0 %v1985
      %2012 = vmatprep.subr.bf16.mxu0 0
      %2013 = vmatpush2.bf16.msra.mxu0 0
      %2014 = vmatprep.subr.bf16.mxu0 0
      %2015 = vmatpush2.bf16.msra.mxu0 0
      %2016 = vmatprep.subr.bf16.mxu0 0
      %2017 = vmatpush2.bf16.msra.mxu0 0
      %2018 = vmatprep.subr.bf16.mxu0 0
      %2019 = vmatpush2.bf16.msra.mxu0 0
      %2020 = vmatprep.subr.bf16.mxu0 0
      %2021 = vmatpush2.bf16.msra.mxu0 0
      %2022 = vmatprep.subr.bf16.mxu0 0
      %2023 = vmatpush2.bf16.msra.mxu0 0
      %2024 = vmatprep.subr.bf16.mxu0 0
      %2025 = vmatpush2.bf16.msra.mxu0 0
      %2026 = vmatprep.subr.bf16.mxu0 0
      %2027 = vmatpush2.bf16.msra.mxu0 0
      %2028 = vmatprep.mubr.bf16.mxu0 0
      %2029 = vmatmul.mubr.bf16.gmra.mxu0 %v1994
      %v2030 = vpop.f32.mrf.mxu0
      %v2031 = vadd.f32 0.0, %v2030
      %v2032 = vpop.f32.mrf.mxu0
      %v2033 = vpop.f32.mrf.mxu0
      %v2034 = vadd.f32 0.0, %v2033
      %v2035 = vpop.f32.mrf.mxu0
      %2036 = vdwg.mxu0
      %2037 = vst.msk [vmem:[#allocation2] sm:$0xff] %vm565, %v2031
      %2038 = vst.msk [vmem:[#allocation2 + $0x8] sm:$0xff] %vm565, %v2034
      %p2039 = scmp.eq.s32.totalorder %s27, 1
      // Predicated region
      $region76: #{mamba_for_ner_forward.1} parent=63 // pred_check
        %p2040 = pneg %p2039
      $region77: #{mamba_for_ner_forward.1} parent=63 // pred_check_branch
        %2042 = sbr.rel (%p2040) target = $region79
      $region78: #{mamba_for_ner_forward.1} parent=63 // pred_region
        %v2043 = vadd.f32 %v2031, %v563
        %v2044 = vadd.f32 %v2034, %v564
        %v2045 = vmul.f32 %v2043, %v2043
        %v2046 = vmul.f32 %v2044, %v2044
        %v2047 = vsel %vm565, %v2045, 0.0
        %2048 = vadd.xlane.f32.xlu0 %v2047
        %v2049 = vpop.xlane.xlu0 %2048
        %v2050 = vsel %vm565, %v2046, 0.0
        %2051 = vadd.xlane.f32.xlu0 %v2050
        %v2052 = vpop.xlane.xlu0 %2051
        %v2053 = vmul.f32 %v2049, %v576
        %v2054 = vmul.f32 %v2052, %v576
        %v2055 = vadd.f32 %v2053, 1e-05
        %v2056 = vadd.f32 %v2054, 1e-05
        %v2057 = vrsqrt.pop %v2055
        %v2058 = vrsqrt.pop %v2056
        %v2059 = vmul.f32 %v2043, %v2057
        %v2060 = vmul.f32 %v2044, %v2058
        %v2061 = vld [vmem:[%s9] sm:$0x1]
        %v2063 = vlaneseq
        %v2064 = vshrl.u32 %v2063, 7
        %v2065 = vsub.s32 0, %v2064
        %v2066 = vrot.slane %v2061, %v2065
        %v2068 = vmul.f32 %v2059, %v2066
        %v2069 = vmul.f32 %v2060, %v2066
        %v2070 = vpack.c.bf16 %v2069, %v2068
        %v2071 = vld [vmem:[%s10] sm:$0xf]
        %v2072 = vld [vmem:[%s10 + $0x4] sm:$0xf]
        %v2073 = vld [vmem:[%s10 + $0x8] sm:$0xf]
        %v2074 = vld [vmem:[%s10 + $0xc] sm:$0xf]
        %v2079 = vunpack.c.l.b16 %v2071
        %v2080 = vunpack.c.l.b16 %v2072
        %v2081 = vunpack.c.l.b16 %v2073
        %v2082 = vunpack.c.l.b16 %v2074
        %v2083 = vpack.c.b16 %v2080, %v2079
        %v2084 = vpack.c.b16 %v2082, %v2081
        %v2088 = vsel %vm565, %v2070, 0
        %2090 = vmatprep.subr.bf16.mxu0 0
        %2091 = vmatpush1.bf16.msra.mxu0 0
        %2092 = vmatprep.subr.bf16.mxu0 0
        %2093 = vmatpush1.bf16.msra.mxu0 0
        %2094 = vmatprep.subr.bf16.mxu0 0
        %2095 = vmatpush1.bf16.msra.mxu0 0
        %2096 = vmatprep.subr.bf16.mxu0 0
        %2097 = vmatpush1.bf16.msra.mxu0 0
        %2098 = vmatprep.subr.bf16.mxu0 0
        %2099 = vmatpush1.bf16.msra.mxu0 0
        %2100 = vmatprep.subr.bf16.mxu0 0
        %2101 = vmatpush1.bf16.msra.mxu0 0
        %2102 = vmatprep.subr.bf16.mxu0 0
        %2103 = vmatpush1.bf16.msra.mxu0 %v2084
        %2104 = vmatprep.subr.bf16.mxu0 0
        %2105 = vmatpush1.bf16.msra.mxu0 %v2083
        %2106 = vmatprep.subr.bf16.mxu0 0
        %2107 = vmatpush2.bf16.msra.mxu0 0
        %2108 = vmatprep.subr.bf16.mxu0 0
        %2109 = vmatpush2.bf16.msra.mxu0 0
        %2110 = vmatprep.subr.bf16.mxu0 0
        %2111 = vmatpush2.bf16.msra.mxu0 0
        %2112 = vmatprep.subr.bf16.mxu0 0
        %2113 = vmatpush2.bf16.msra.mxu0 0
        %2114 = vmatprep.subr.bf16.mxu0 0
        %2115 = vmatpush2.bf16.msra.mxu0 0
        %2116 = vmatprep.subr.bf16.mxu0 0
        %2117 = vmatpush2.bf16.msra.mxu0 0
        %2118 = vmatprep.subr.bf16.mxu0 0
        %2119 = vmatpush2.bf16.msra.mxu0 0
        %2120 = vmatprep.subr.bf16.mxu0 0
        %2121 = vmatpush2.bf16.msra.mxu0 0
        %2122 = vmatprep.mubr.bf16.mxu0 0
        %2123 = vmatmul.mubr.bf16.gmra.mxu0 %v2088
        %v2124 = vpop.f32.mrf.mxu0
        %v2125 = vadd.f32 0.0, %v2124
        %v2126 = vpop.f32.mrf.mxu0
        %v2127 = vpop.f32.mrf.mxu0
        %v2128 = vadd.f32 0.0, %v2127
        %v2129 = vpop.f32.mrf.mxu0
        %2130 = vdwg.mxu0
        %2131 = vst [vmem:[%s546] sm:$0xff] %v2125
        %2132 = vst [vmem:[%s546 + $0x8] sm:$0xff] %v2128
      $region79: #{mamba_for_ner_forward.1} parent=63 // pred_fallthru
        _
      %p2133 = scmp.lt.s32.totalorder %s26, 1
      %s2134 = scalar_select %p2133, %s26, 1
      %s2135 = smul.addr %s2134, 2
      %s2136 = smul.addr %s2135, 8
      %s2137 = scalar_lea.vmem %s11, %s2136
      // Predicated region
      $region80: #{mamba_for_ner_forward.1} parent=63 // pred_check
        %p2138 = pneg %p328
      $region81: #{mamba_for_ner_forward.1} parent=63 // pred_check_branch
        %2140 = sbr.rel (%p2138) target = $region83
      $region82: #{mamba_for_ner_forward.1} parent=63 // pred_region
        _
      $region83: #{mamba_for_ner_forward.1} parent=63 // pred_fallthru
        _
    $region64: #{mamba_for_ner_forward.1} parent=5 // pred_fallthru
      _
    %p2141 = scmp.le.s32.totalorder 2, %s17
    // Predicated region
    $region84: #{mamba_for_ner_forward.1} parent=5 // pred_check
      %p2142 = pneg %p2141
    $region85: #{mamba_for_ner_forward.1} parent=5 // pred_check_branch
      %2144 = sbr.rel (%p2142) target = $region87
    $region86: #{mamba_for_ner_forward.1} parent=5 // pred_region
      %s2145 = ssub.s32 %s17, 2
      // Predicated region
      $region88: #{mamba_for_ner_forward.1} parent=86 // pred_check
        %p2146 = pneg %p334
      $region89: #{mamba_for_ner_forward.1} parent=86 // pred_check_branch
        %2148 = sbr.rel (%p2146) target = $region91
      $region90: #{mamba_for_ner_forward.1} parent=86 // pred_region
        %p2149 = scmp.lt.s32.totalorder %s28, 1
        %s2150 = scalar_select %p2149, %s28, 1
        %s2151 = smul.addr %s2150, 2
        %s2152 = smul.addr %s2151, 8
        %s2153 = scalar_lea.vmem %s11, %s2152
      $region91: #{mamba_for_ner_forward.1} parent=86 // pred_fallthru
        _
    $region87: #{mamba_for_ner_forward.1} parent=5 // pred_fallthru
      _
  $region6: #{mamba_for_ner_forward.1} parent=0 // loop_footer
    %s21 = sadd.s32 1, %s17
  $region7: #{mamba_for_ner_forward.1} parent=0 // loop_footer_branch
    %16 = sbr.rel target = $region3
  $region8: #{mamba_for_ner_forward.1} parent=0 // loop_exit
    _

</llo_original>
